<compile_context>
chip_gen: v7x
topology: tpu7x:2x2x1
jax: 0.10.0
libtpu: 0.0.40
codegen_flags: <defaults>
</compile_context>

<pallas_src>
import jax
import jax.numpy as jnp
from jax import lax
from jax.experimental import pallas as pl
from jax.experimental.pallas import tpu as pltpu


# ----------------------------- Pallas kernel --------------------------------

def nonlinear1d_kernel(x_ref, cond_ref,
                       w1xt_ref, w1xs_ref, w1ct_ref, w1cs_ref,
                       w2ht_ref, w2hs_ref, w2ct_ref, w2cs_ref,
                       w3_ref, b3_ref, o_ref):
    x = x_ref[...]          # (Cin,   T)  channels on sublanes, time on lanes
    cond = cond_ref[...]    # (Ccond, T)
    T = x.shape[-1]

    # Hoisted boundary masks for the zero-padded k=3 convs (time on lanes).
    t_idx = lax.broadcasted_iota(jnp.int32, (1, T), 1)
    is_first = t_idx == 0
    is_last = t_idx == T - 1

    def shifts(a):
        # a[:, t-1] (zero at t==0) and a[:, t+1] (zero at t==T-1).
        prev = jnp.where(is_first, 0.0, pltpu.roll(a, shift=1, axis=1))
        nxt = jnp.where(is_last, 0.0, pltpu.roll(a, shift=T - 1, axis=1))
        return prev, nxt

    def conv3(prev, cur, nxt, taps):
        # k=3, padding=1 conv as 3 shifted (O,C)x(C,T) matmuls. taps: (3, O, C)
        return (jnp.dot(taps[0], prev, preferred_element_type=jnp.float32)
                + jnp.dot(taps[1], cur, preferred_element_type=jnp.float32)
                + jnp.dot(taps[2], nxt, preferred_element_type=jnp.float32))

    def gated(y_t, y_s):
        # tanh(y_t) * sigmoid(y_s); sigmoid via tanh identity (1 EUP op, not 2).
        return jnp.tanh(y_t) * (0.5 * (jnp.tanh(0.5 * y_s) + 1.0))

    x_p, x_n = shifts(x)
    c_p, c_n = shifts(cond)

    # ConditionedConv1d #0: k=3, pad=1, gated tanh * sigmoid.
    y_t = conv3(x_p, x, x_n, w1xt_ref[...]) + conv3(c_p, cond, c_n, w1ct_ref[...])
    y_s = conv3(x_p, x, x_n, w1xs_ref[...]) + conv3(c_p, cond, c_n, w1cs_ref[...])
    h = gated(y_t, y_s)                                            # (H, T)

    # ConditionedConv1d #1: k=1, gated, residual add.
    z_t = (jnp.dot(w2ht_ref[...], h, preferred_element_type=jnp.float32)
           + jnp.dot(w2ct_ref[...], cond, preferred_element_type=jnp.float32))
    z_s = (jnp.dot(w2hs_ref[...], h, preferred_element_type=jnp.float32)
           + jnp.dot(w2cs_ref[...], cond, preferred_element_type=jnp.float32))
    h = h + gated(z_t, z_s)

    # last_conv: k=3, pad=1, with bias.
    h_p, h_n = shifts(h)
    o_ref[...] = conv3(h_p, h, h_n, w3_ref[...]) + b3_ref[...]     # (Cout, T)


# ------------------------------- wrapper -------------------------------------

def nonlinear1d(x_ncw, cond_ncw, params):
    """x_ncw: (B, C, T), cond_ncw: (B, Ccond, T)  -> (B, C, T)  (PyTorch NCW)."""
    W1, W2, W3, b3 = params["w1"], params["w2"], params["w3"], params["b3"]
    B, Cin, T = x_ncw.shape
    Ccond = cond_ncw.shape[1]
    Cout, H, _ = W3.shape

    f32 = jnp.float32
    x = x_ncw.astype(f32)
    cond = cond_ncw.astype(f32)

    # Split conv weights per input path (x vs cond) and per gate half
    # (tanh vs sigmoid); reorder to (taps, out_channels, in_channels) so the
    # kernel does (O,C)x(C,T) dots with no in-kernel concats or gate slices.
    w1 = jnp.transpose(W1, (2, 0, 1)).astype(f32)      # (3, 2H, Cin+Ccond)
    w1xt, w1xs = w1[:, :H, :Cin], w1[:, H:, :Cin]      # (3, H, Cin)
    w1ct, w1cs = w1[:, :H, Cin:], w1[:, H:, Cin:]      # (3, H, Ccond)

    w2 = W2[:, :, 0].astype(f32)                       # (2H, H+Ccond)
    w2ht, w2hs = w2[:H, :H], w2[H:, :H]                # (H, H)
    w2ct, w2cs = w2[:H, H:], w2[H:, H:]                # (H, Ccond)

    w3 = jnp.transpose(W3, (2, 0, 1)).astype(f32)      # (3, Cout, H)
    b3r = b3.reshape(Cout, 1).astype(f32)              # (Cout, 1), bcast over T

    full = lambda arr: pl.BlockSpec(arr.shape, lambda b: (0,) * arr.ndim)

    # TODO(synk): for very long sequences, tile T (grid=(B, T//tT)) with a
    # 2-column halo so VMEM stays bounded; whole-T-resident is right here.
    out = pl.pallas_call(
        nonlinear1d_kernel,
        out_shape=jax.ShapeDtypeStruct((B, Cout, T), f32),
        grid=(B,),
        in_specs=[
            pl.BlockSpec((None, Cin, T), lambda b: (b, 0, 0)),
            pl.BlockSpec((None, Ccond, T), lambda b: (b, 0, 0)),
            full(w1xt), full(w1xs), full(w1ct), full(w1cs),
            full(w2ht), full(w2hs), full(w2ct), full(w2cs),
            full(w3), full(b3r),
        ],
        out_specs=pl.BlockSpec((None, Cout, T), lambda b: (b, 0, 0)),
        compiler_params=pltpu.CompilerParams(
            dimension_semantics=("parallel",)),
    )(x, cond, w1xt, w1xs, w1ct, w1cs, w2ht, w2hs, w2ct, w2cs, w3, b3r)
    return out


# --------------------------- pure-JAX reference -------------------------------

def _conv1d_ref(x, w, padding, bias=None):
    out = lax.conv_general_dilated(
        x, w, window_strides=(1,), padding=[(padding, padding)],
        dimension_numbers=("NCH", "OIH", "NCH"))
    if bias is not None:
        out = out + bias[None, :, None]
    return out


def nonlinear1d_ref(x, cond, params):
    H = params["w3"].shape[1]
    y1 = _conv1d_ref(jnp.concatenate([x, cond], axis=1), params["w1"], 1)
    h = jnp.tanh(y1[:, :H]) * jax.nn.sigmoid(y1[:, H:])
    y2 = _conv1d_ref(jnp.concatenate([h, cond], axis=1), params["w2"], 0)
    h = h + jnp.tanh(y2[:, :H]) * jax.nn.sigmoid(y2[:, H:])
    return _conv1d_ref(h, params["w3"], 1, params["b3"])


# --------------------------------- main ---------------------------------------

if __name__ == "__main__":
    B, C, Ccond, H, T = 2, 4, 4, 32, 16
    key = jax.random.PRNGKey(0)
    ks = jax.random.split(key, 6)

    x = jax.random.normal(ks[0], (B, C, T), jnp.float32)
    cond = jax.random.normal(ks[1], (B, Ccond, T), jnp.float32)

    params = {
        # filter_out weights ~ N(0, 0.02), no bias (as in __init__)
        "w1": 0.02 * jax.random.normal(ks[2], (2 * H, C + Ccond, 3), jnp.float32),
        "w2": 0.02 * jax.random.normal(ks[3], (2 * H, H + Ccond, 1), jnp.float32),
        # NOTE(synk): the module zero-inits last_conv (output would be all-zero);
        # use deterministic random values here so the kernel path is exercised.
        "w3": 0.02 * jax.random.normal(ks[4], (C, H, 3), jnp.float32),
        "b3": 0.02 * jax.random.normal(ks[5], (C,), jnp.float32),
    }

    out = jax.block_until_ready(nonlinear1d(x, cond, params))
    ref = nonlinear1d_ref(x, cond, params)

    assert out.shape == (B, C, T), out.shape
    max_err = float(jnp.max(jnp.abs(out - ref)))
    assert jnp.allclose(out, ref, atol=2e-3, rtol=2e-3), f"max_err={max_err}"
    print("KERNEL_OK")
</pallas_src>

<mosaic_0001>
module attributes {stable_mosaic.version = 11 : i64} {
  func.func @nonlinear1d_kernel(%arg0: i32, %arg1: memref<1x4x16xf32, #tpu.memory_space<vmem>>, %arg2: memref<1x4x16xf32, #tpu.memory_space<vmem>>, %arg3: memref<3x32x4xf32, #tpu.memory_space<vmem>>, %arg4: memref<3x32x4xf32, #tpu.memory_space<vmem>>, %arg5: memref<3x32x4xf32, #tpu.memory_space<vmem>>, %arg6: memref<3x32x4xf32, #tpu.memory_space<vmem>>, %arg7: memref<32x32xf32, #tpu.memory_space<vmem>>, %arg8: memref<32x32xf32, #tpu.memory_space<vmem>>, %arg9: memref<32x4xf32, #tpu.memory_space<vmem>>, %arg10: memref<32x4xf32, #tpu.memory_space<vmem>>, %arg11: memref<3x4x32xf32, #tpu.memory_space<vmem>>, %arg12: memref<4x1xf32, #tpu.memory_space<vmem>>, %arg13: memref<1x4x16xf32, #tpu.memory_space<vmem>>) attributes {dimension_semantics = [#tpu.dimension_semantics<parallel>], iteration_bounds = array<i64: 2>, scalar_prefetch = 0 : i64, scratch_operands = 0 : i64, tpu.core_type = #tpu.core_type<tc>, window_params = [{transform_indices = @transform_0, window_bounds = array<i64: 1, 4, 16>}, {transform_indices = @transform_1, window_bounds = array<i64: 1, 4, 16>}, {pipeline_mode = #tpu.pipeline_mode<synchronous>, transform_indices = @transform_2, window_bounds = array<i64: 3, 32, 4>}, {pipeline_mode = #tpu.pipeline_mode<synchronous>, transform_indices = @transform_3, window_bounds = array<i64: 3, 32, 4>}, {pipeline_mode = #tpu.pipeline_mode<synchronous>, transform_indices = @transform_4, window_bounds = array<i64: 3, 32, 4>}, {pipeline_mode = #tpu.pipeline_mode<synchronous>, transform_indices = @transform_5, window_bounds = array<i64: 3, 32, 4>}, {pipeline_mode = #tpu.pipeline_mode<synchronous>, transform_indices = @transform_6, window_bounds = array<i64: 32, 32>}, {pipeline_mode = #tpu.pipeline_mode<synchronous>, transform_indices = @transform_7, window_bounds = array<i64: 32, 32>}, {pipeline_mode = #tpu.pipeline_mode<synchronous>, transform_indices = @transform_8, window_bounds = array<i64: 32, 4>}, {pipeline_mode = #tpu.pipeline_mode<synchronous>, transform_indices = @transform_9, window_bounds = array<i64: 32, 4>}, {pipeline_mode = #tpu.pipeline_mode<synchronous>, transform_indices = @transform_10, window_bounds = array<i64: 3, 4, 32>}, {pipeline_mode = #tpu.pipeline_mode<synchronous>, transform_indices = @transform_11, window_bounds = array<i64: 4, 1>}, {transform_indices = @transform_12, window_bounds = array<i64: 1, 4, 16>}]} {
    %c0 = arith.constant 0 : index
    %c0_0 = arith.constant 0 : index
    %c0_1 = arith.constant 0 : index
    %0 = vector.load %arg1[%c0, %c0_0, %c0_1] : memref<1x4x16xf32, #tpu.memory_space<vmem>>, vector<1x4x16xf32>
    %1 = vector.shape_cast %0 : vector<1x4x16xf32> to vector<4x16xf32>
    %c0_2 = arith.constant 0 : index
    %c0_3 = arith.constant 0 : index
    %c0_4 = arith.constant 0 : index
    %2 = vector.load %arg2[%c0_2, %c0_3, %c0_4] : memref<1x4x16xf32, #tpu.memory_space<vmem>>, vector<1x4x16xf32>
    %3 = vector.shape_cast %2 : vector<1x4x16xf32> to vector<4x16xf32>
    %4 = tpu.iota {dimensions = array<i32: 1>} : vector<1x16xi32>
    %c0_i32 = arith.constant 0 : i32
    %5 = vector.broadcast %c0_i32 : i32 to vector<1x16xi32>
    %6 = arith.cmpi eq, %4, %5 : vector<1x16xi32>
    %c15_i32 = arith.constant 15 : i32
    %7 = vector.broadcast %c15_i32 : i32 to vector<1x16xi32>
    %8 = arith.cmpi eq, %4, %7 : vector<1x16xi32>
    %c1_i32 = arith.constant 1 : i32
    %9 = tpu.dynamic_rotate %1 by %c1_i32 dim 1 : vector<4x16xf32>, i32 -> vector<4x16xf32>
    %cst = arith.constant 0.000000e+00 : f32
    %10 = vector.shape_cast %6 : vector<1x16xi1> to vector<1x16xi1>
    %11 = vector.broadcast %10 : vector<1x16xi1> to vector<4x16xi1>
    %12 = vector.broadcast %cst : f32 to vector<4x16xf32>
    %13 = arith.select %11, %12, %9 : vector<4x16xi1>, vector<4x16xf32>
    %c15_i32_5 = arith.constant 15 : i32
    %14 = tpu.dynamic_rotate %1 by %c15_i32_5 dim 1 : vector<4x16xf32>, i32 -> vector<4x16xf32>
    %cst_6 = arith.constant 0.000000e+00 : f32
    %15 = vector.shape_cast %8 : vector<1x16xi1> to vector<1x16xi1>
    %16 = vector.broadcast %15 : vector<1x16xi1> to vector<4x16xi1>
    %17 = vector.broadcast %cst_6 : f32 to vector<4x16xf32>
    %18 = arith.select %16, %17, %14 : vector<4x16xi1>, vector<4x16xf32>
    %c1_i32_7 = arith.constant 1 : i32
    %19 = tpu.dynamic_rotate %3 by %c1_i32_7 dim 1 : vector<4x16xf32>, i32 -> vector<4x16xf32>
    %cst_8 = arith.constant 0.000000e+00 : f32
    %20 = vector.shape_cast %6 : vector<1x16xi1> to vector<1x16xi1>
    %21 = vector.broadcast %20 : vector<1x16xi1> to vector<4x16xi1>
    %22 = vector.broadcast %cst_8 : f32 to vector<4x16xf32>
    %23 = arith.select %21, %22, %19 : vector<4x16xi1>, vector<4x16xf32>
    %c15_i32_9 = arith.constant 15 : i32
    %24 = tpu.dynamic_rotate %3 by %c15_i32_9 dim 1 : vector<4x16xf32>, i32 -> vector<4x16xf32>
    %cst_10 = arith.constant 0.000000e+00 : f32
    %25 = vector.shape_cast %8 : vector<1x16xi1> to vector<1x16xi1>
    %26 = vector.broadcast %25 : vector<1x16xi1> to vector<4x16xi1>
    %27 = vector.broadcast %cst_10 : f32 to vector<4x16xf32>
    %28 = arith.select %26, %27, %24 : vector<4x16xi1>, vector<4x16xf32>
    %c0_11 = arith.constant 0 : index
    %c0_12 = arith.constant 0 : index
    %c0_13 = arith.constant 0 : index
    %29 = vector.load %arg3[%c0_11, %c0_12, %c0_13] : memref<3x32x4xf32, #tpu.memory_space<vmem>>, vector<3x32x4xf32>
    %30 = vector.extract_strided_slice %29 {offsets = [0, 0, 0], sizes = [1, 32, 4], strides = [1, 1, 1]} : vector<3x32x4xf32> to vector<1x32x4xf32>
    %31 = vector.shape_cast %30 : vector<1x32x4xf32> to vector<32x4xf32>
    %cst_14 = arith.constant dense<0.000000e+00> : vector<32x16xf32>
    %32 = tpu.matmul %31, %13, %cst_14 {dimension_numbers = #tpu.dot_dimension_numbers<[1], [0], [0], [1], [0, 0, 1, 1], [], []>} : vector<32x4xf32>, vector<4x16xf32>, vector<32x16xf32> -> vector<32x16xf32>
    %33 = vector.extract_strided_slice %29 {offsets = [1, 0, 0], sizes = [1, 32, 4], strides = [1, 1, 1]} : vector<3x32x4xf32> to vector<1x32x4xf32>
    %34 = vector.shape_cast %33 : vector<1x32x4xf32> to vector<32x4xf32>
    %cst_15 = arith.constant dense<0.000000e+00> : vector<32x16xf32>
    %35 = tpu.matmul %34, %1, %cst_15 {dimension_numbers = #tpu.dot_dimension_numbers<[1], [0], [0], [1], [0, 0, 1, 1], [], []>} : vector<32x4xf32>, vector<4x16xf32>, vector<32x16xf32> -> vector<32x16xf32>
    %36 = arith.addf %32, %35 : vector<32x16xf32>
    %37 = vector.extract_strided_slice %29 {offsets = [2, 0, 0], sizes = [1, 32, 4], strides = [1, 1, 1]} : vector<3x32x4xf32> to vector<1x32x4xf32>
    %38 = vector.shape_cast %37 : vector<1x32x4xf32> to vector<32x4xf32>
    %cst_16 = arith.constant dense<0.000000e+00> : vector<32x16xf32>
    %39 = tpu.matmul %38, %18, %cst_16 {dimension_numbers = #tpu.dot_dimension_numbers<[1], [0], [0], [1], [0, 0, 1, 1], [], []>} : vector<32x4xf32>, vector<4x16xf32>, vector<32x16xf32> -> vector<32x16xf32>
    %40 = arith.addf %36, %39 : vector<32x16xf32>
    %c0_17 = arith.constant 0 : index
    %c0_18 = arith.constant 0 : index
    %c0_19 = arith.constant 0 : index
    %41 = vector.load %arg5[%c0_17, %c0_18, %c0_19] : memref<3x32x4xf32, #tpu.memory_space<vmem>>, vector<3x32x4xf32>
    %42 = vector.extract_strided_slice %41 {offsets = [0, 0, 0], sizes = [1, 32, 4], strides = [1, 1, 1]} : vector<3x32x4xf32> to vector<1x32x4xf32>
    %43 = vector.shape_cast %42 : vector<1x32x4xf32> to vector<32x4xf32>
    %cst_20 = arith.constant dense<0.000000e+00> : vector<32x16xf32>
    %44 = tpu.matmul %43, %23, %cst_20 {dimension_numbers = #tpu.dot_dimension_numbers<[1], [0], [0], [1], [0, 0, 1, 1], [], []>} : vector<32x4xf32>, vector<4x16xf32>, vector<32x16xf32> -> vector<32x16xf32>
    %45 = vector.extract_strided_slice %41 {offsets = [1, 0, 0], sizes = [1, 32, 4], strides = [1, 1, 1]} : vector<3x32x4xf32> to vector<1x32x4xf32>
    %46 = vector.shape_cast %45 : vector<1x32x4xf32> to vector<32x4xf32>
    %cst_21 = arith.constant dense<0.000000e+00> : vector<32x16xf32>
    %47 = tpu.matmul %46, %3, %cst_21 {dimension_numbers = #tpu.dot_dimension_numbers<[1], [0], [0], [1], [0, 0, 1, 1], [], []>} : vector<32x4xf32>, vector<4x16xf32>, vector<32x16xf32> -> vector<32x16xf32>
    %48 = arith.addf %44, %47 : vector<32x16xf32>
    %49 = vector.extract_strided_slice %41 {offsets = [2, 0, 0], sizes = [1, 32, 4], strides = [1, 1, 1]} : vector<3x32x4xf32> to vector<1x32x4xf32>
    %50 = vector.shape_cast %49 : vector<1x32x4xf32> to vector<32x4xf32>
    %cst_22 = arith.constant dense<0.000000e+00> : vector<32x16xf32>
    %51 = tpu.matmul %50, %28, %cst_22 {dimension_numbers = #tpu.dot_dimension_numbers<[1], [0], [0], [1], [0, 0, 1, 1], [], []>} : vector<32x4xf32>, vector<4x16xf32>, vector<32x16xf32> -> vector<32x16xf32>
    %52 = arith.addf %48, %51 : vector<32x16xf32>
    %53 = arith.addf %40, %52 : vector<32x16xf32>
    %c0_23 = arith.constant 0 : index
    %c0_24 = arith.constant 0 : index
    %c0_25 = arith.constant 0 : index
    %54 = vector.load %arg4[%c0_23, %c0_24, %c0_25] : memref<3x32x4xf32, #tpu.memory_space<vmem>>, vector<3x32x4xf32>
    %55 = vector.extract_strided_slice %54 {offsets = [0, 0, 0], sizes = [1, 32, 4], strides = [1, 1, 1]} : vector<3x32x4xf32> to vector<1x32x4xf32>
    %56 = vector.shape_cast %55 : vector<1x32x4xf32> to vector<32x4xf32>
    %cst_26 = arith.constant dense<0.000000e+00> : vector<32x16xf32>
    %57 = tpu.matmul %56, %13, %cst_26 {dimension_numbers = #tpu.dot_dimension_numbers<[1], [0], [0], [1], [0, 0, 1, 1], [], []>} : vector<32x4xf32>, vector<4x16xf32>, vector<32x16xf32> -> vector<32x16xf32>
    %58 = vector.extract_strided_slice %54 {offsets = [1, 0, 0], sizes = [1, 32, 4], strides = [1, 1, 1]} : vector<3x32x4xf32> to vector<1x32x4xf32>
    %59 = vector.shape_cast %58 : vector<1x32x4xf32> to vector<32x4xf32>
    %cst_27 = arith.constant dense<0.000000e+00> : vector<32x16xf32>
    %60 = tpu.matmul %59, %1, %cst_27 {dimension_numbers = #tpu.dot_dimension_numbers<[1], [0], [0], [1], [0, 0, 1, 1], [], []>} : vector<32x4xf32>, vector<4x16xf32>, vector<32x16xf32> -> vector<32x16xf32>
    %61 = arith.addf %57, %60 : vector<32x16xf32>
    %62 = vector.extract_strided_slice %54 {offsets = [2, 0, 0], sizes = [1, 32, 4], strides = [1, 1, 1]} : vector<3x32x4xf32> to vector<1x32x4xf32>
    %63 = vector.shape_cast %62 : vector<1x32x4xf32> to vector<32x4xf32>
    %cst_28 = arith.constant dense<0.000000e+00> : vector<32x16xf32>
    %64 = tpu.matmul %63, %18, %cst_28 {dimension_numbers = #tpu.dot_dimension_numbers<[1], [0], [0], [1], [0, 0, 1, 1], [], []>} : vector<32x4xf32>, vector<4x16xf32>, vector<32x16xf32> -> vector<32x16xf32>
    %65 = arith.addf %61, %64 : vector<32x16xf32>
    %c0_29 = arith.constant 0 : index
    %c0_30 = arith.constant 0 : index
    %c0_31 = arith.constant 0 : index
    %66 = vector.load %arg6[%c0_29, %c0_30, %c0_31] : memref<3x32x4xf32, #tpu.memory_space<vmem>>, vector<3x32x4xf32>
    %67 = vector.extract_strided_slice %66 {offsets = [0, 0, 0], sizes = [1, 32, 4], strides = [1, 1, 1]} : vector<3x32x4xf32> to vector<1x32x4xf32>
    %68 = vector.shape_cast %67 : vector<1x32x4xf32> to vector<32x4xf32>
    %cst_32 = arith.constant dense<0.000000e+00> : vector<32x16xf32>
    %69 = tpu.matmul %68, %23, %cst_32 {dimension_numbers = #tpu.dot_dimension_numbers<[1], [0], [0], [1], [0, 0, 1, 1], [], []>} : vector<32x4xf32>, vector<4x16xf32>, vector<32x16xf32> -> vector<32x16xf32>
    %70 = vector.extract_strided_slice %66 {offsets = [1, 0, 0], sizes = [1, 32, 4], strides = [1, 1, 1]} : vector<3x32x4xf32> to vector<1x32x4xf32>
    %71 = vector.shape_cast %70 : vector<1x32x4xf32> to vector<32x4xf32>
    %cst_33 = arith.constant dense<0.000000e+00> : vector<32x16xf32>
    %72 = tpu.matmul %71, %3, %cst_33 {dimension_numbers = #tpu.dot_dimension_numbers<[1], [0], [0], [1], [0, 0, 1, 1], [], []>} : vector<32x4xf32>, vector<4x16xf32>, vector<32x16xf32> -> vector<32x16xf32>
    %73 = arith.addf %69, %72 : vector<32x16xf32>
    %74 = vector.extract_strided_slice %66 {offsets = [2, 0, 0], sizes = [1, 32, 4], strides = [1, 1, 1]} : vector<3x32x4xf32> to vector<1x32x4xf32>
    %75 = vector.shape_cast %74 : vector<1x32x4xf32> to vector<32x4xf32>
    %cst_34 = arith.constant dense<0.000000e+00> : vector<32x16xf32>
    %76 = tpu.matmul %75, %28, %cst_34 {dimension_numbers = #tpu.dot_dimension_numbers<[1], [0], [0], [1], [0, 0, 1, 1], [], []>} : vector<32x4xf32>, vector<4x16xf32>, vector<32x16xf32> -> vector<32x16xf32>
    %77 = arith.addf %73, %76 : vector<32x16xf32>
    %78 = arith.addf %65, %77 : vector<32x16xf32>
    %79 = math.tanh %53 : vector<32x16xf32>
    %cst_35 = arith.constant 5.000000e-01 : f32
    %80 = vector.broadcast %cst_35 : f32 to vector<32x16xf32>
    %81 = arith.mulf %80, %78 : vector<32x16xf32>
    %82 = math.tanh %81 : vector<32x16xf32>
    %cst_36 = arith.constant 1.000000e+00 : f32
    %83 = vector.broadcast %cst_36 : f32 to vector<32x16xf32>
    %84 = arith.addf %82, %83 : vector<32x16xf32>
    %cst_37 = arith.constant 5.000000e-01 : f32
    %85 = vector.broadcast %cst_37 : f32 to vector<32x16xf32>
    %86 = arith.mulf %85, %84 : vector<32x16xf32>
    %87 = arith.mulf %79, %86 : vector<32x16xf32>
    %c0_38 = arith.constant 0 : index
    %c0_39 = arith.constant 0 : index
    %88 = vector.load %arg7[%c0_38, %c0_39] : memref<32x32xf32, #tpu.memory_space<vmem>>, vector<32x32xf32>
    %cst_40 = arith.constant dense<0.000000e+00> : vector<32x16xf32>
    %89 = tpu.matmul %88, %87, %cst_40 {dimension_numbers = #tpu.dot_dimension_numbers<[1], [0], [0], [1], [0, 0, 1, 1], [], []>} : vector<32x32xf32>, vector<32x16xf32>, vector<32x16xf32> -> vector<32x16xf32>
    %c0_41 = arith.constant 0 : index
    %c0_42 = arith.constant 0 : index
    %90 = vector.load %arg9[%c0_41, %c0_42] : memref<32x4xf32, #tpu.memory_space<vmem>>, vector<32x4xf32>
    %cst_43 = arith.constant dense<0.000000e+00> : vector<32x16xf32>
    %91 = tpu.matmul %90, %3, %cst_43 {dimension_numbers = #tpu.dot_dimension_numbers<[1], [0], [0], [1], [0, 0, 1, 1], [], []>} : vector<32x4xf32>, vector<4x16xf32>, vector<32x16xf32> -> vector<32x16xf32>
    %92 = arith.addf %89, %91 : vector<32x16xf32>
    %c0_44 = arith.constant 0 : index
    %c0_45 = arith.constant 0 : index
    %93 = vector.load %arg8[%c0_44, %c0_45] : memref<32x32xf32, #tpu.memory_space<vmem>>, vector<32x32xf32>
    %cst_46 = arith.constant dense<0.000000e+00> : vector<32x16xf32>
    %94 = tpu.matmul %93, %87, %cst_46 {dimension_numbers = #tpu.dot_dimension_numbers<[1], [0], [0], [1], [0, 0, 1, 1], [], []>} : vector<32x32xf32>, vector<32x16xf32>, vector<32x16xf32> -> vector<32x16xf32>
    %c0_47 = arith.constant 0 : index
    %c0_48 = arith.constant 0 : index
    %95 = vector.load %arg10[%c0_47, %c0_48] : memref<32x4xf32, #tpu.memory_space<vmem>>, vector<32x4xf32>
    %cst_49 = arith.constant dense<0.000000e+00> : vector<32x16xf32>
    %96 = tpu.matmul %95, %3, %cst_49 {dimension_numbers = #tpu.dot_dimension_numbers<[1], [0], [0], [1], [0, 0, 1, 1], [], []>} : vector<32x4xf32>, vector<4x16xf32>, vector<32x16xf32> -> vector<32x16xf32>
    %97 = arith.addf %94, %96 : vector<32x16xf32>
    %98 = math.tanh %92 : vector<32x16xf32>
    %cst_50 = arith.constant 5.000000e-01 : f32
    %99 = vector.broadcast %cst_50 : f32 to vector<32x16xf32>
    %100 = arith.mulf %99, %97 : vector<32x16xf32>
    %101 = math.tanh %100 : vector<32x16xf32>
    %cst_51 = arith.constant 1.000000e+00 : f32
    %102 = vector.broadcast %cst_51 : f32 to vector<32x16xf32>
    %103 = arith.addf %101, %102 : vector<32x16xf32>
    %cst_52 = arith.constant 5.000000e-01 : f32
    %104 = vector.broadcast %cst_52 : f32 to vector<32x16xf32>
    %105 = arith.mulf %104, %103 : vector<32x16xf32>
    %106 = arith.mulf %98, %105 : vector<32x16xf32>
    %107 = arith.addf %87, %106 : vector<32x16xf32>
    %c1_i32_53 = arith.constant 1 : i32
    %108 = tpu.dynamic_rotate %107 by %c1_i32_53 dim 1 : vector<32x16xf32>, i32 -> vector<32x16xf32>
    %cst_54 = arith.constant 0.000000e+00 : f32
    %109 = vector.shape_cast %6 : vector<1x16xi1> to vector<1x16xi1>
    %110 = vector.broadcast %109 : vector<1x16xi1> to vector<32x16xi1>
    %111 = vector.broadcast %cst_54 : f32 to vector<32x16xf32>
    %112 = arith.select %110, %111, %108 : vector<32x16xi1>, vector<32x16xf32>
    %c15_i32_55 = arith.constant 15 : i32
    %113 = tpu.dynamic_rotate %107 by %c15_i32_55 dim 1 : vector<32x16xf32>, i32 -> vector<32x16xf32>
    %cst_56 = arith.constant 0.000000e+00 : f32
    %114 = vector.shape_cast %8 : vector<1x16xi1> to vector<1x16xi1>
    %115 = vector.broadcast %114 : vector<1x16xi1> to vector<32x16xi1>
    %116 = vector.broadcast %cst_56 : f32 to vector<32x16xf32>
    %117 = arith.select %115, %116, %113 : vector<32x16xi1>, vector<32x16xf32>
    %c0_57 = arith.constant 0 : index
    %c0_58 = arith.constant 0 : index
    %c0_59 = arith.constant 0 : index
    %118 = vector.load %arg11[%c0_57, %c0_58, %c0_59] : memref<3x4x32xf32, #tpu.memory_space<vmem>>, vector<3x4x32xf32>
    %119 = vector.extract_strided_slice %118 {offsets = [0, 0, 0], sizes = [1, 4, 32], strides = [1, 1, 1]} : vector<3x4x32xf32> to vector<1x4x32xf32>
    %120 = vector.shape_cast %119 : vector<1x4x32xf32> to vector<4x32xf32>
    %cst_60 = arith.constant dense<0.000000e+00> : vector<4x16xf32>
    %121 = tpu.matmul %120, %112, %cst_60 {dimension_numbers = #tpu.dot_dimension_numbers<[1], [0], [0], [1], [0, 0, 1, 1], [], []>} : vector<4x32xf32>, vector<32x16xf32>, vector<4x16xf32> -> vector<4x16xf32>
    %122 = vector.extract_strided_slice %118 {offsets = [1, 0, 0], sizes = [1, 4, 32], strides = [1, 1, 1]} : vector<3x4x32xf32> to vector<1x4x32xf32>
    %123 = vector.shape_cast %122 : vector<1x4x32xf32> to vector<4x32xf32>
    %cst_61 = arith.constant dense<0.000000e+00> : vector<4x16xf32>
    %124 = tpu.matmul %123, %107, %cst_61 {dimension_numbers = #tpu.dot_dimension_numbers<[1], [0], [0], [1], [0, 0, 1, 1], [], []>} : vector<4x32xf32>, vector<32x16xf32>, vector<4x16xf32> -> vector<4x16xf32>
    %125 = arith.addf %121, %124 : vector<4x16xf32>
    %126 = vector.extract_strided_slice %118 {offsets = [2, 0, 0], sizes = [1, 4, 32], strides = [1, 1, 1]} : vector<3x4x32xf32> to vector<1x4x32xf32>
    %127 = vector.shape_cast %126 : vector<1x4x32xf32> to vector<4x32xf32>
    %cst_62 = arith.constant dense<0.000000e+00> : vector<4x16xf32>
    %128 = tpu.matmul %127, %117, %cst_62 {dimension_numbers = #tpu.dot_dimension_numbers<[1], [0], [0], [1], [0, 0, 1, 1], [], []>} : vector<4x32xf32>, vector<32x16xf32>, vector<4x16xf32> -> vector<4x16xf32>
    %129 = arith.addf %125, %128 : vector<4x16xf32>
    %c0_63 = arith.constant 0 : index
    %c0_64 = arith.constant 0 : index
    %130 = vector.load %arg12[%c0_63, %c0_64] : memref<4x1xf32, #tpu.memory_space<vmem>>, vector<4x1xf32>
    %131 = vector.broadcast %130 : vector<4x1xf32> to vector<4x16xf32>
    %132 = arith.addf %129, %131 : vector<4x16xf32>
    %c0_65 = arith.constant 0 : index
    %c0_66 = arith.constant 0 : index
    %c0_67 = arith.constant 0 : index
    %133 = vector.load %arg13[%c0_65, %c0_66, %c0_67] : memref<1x4x16xf32, #tpu.memory_space<vmem>>, vector<1x4x16xf32>
    %134 = vector.shape_cast %133 : vector<1x4x16xf32> to vector<4x16xf32>
    %135 = vector.shape_cast %132 : vector<4x16xf32> to vector<1x4x16xf32>
    tpu.vector_store %arg13[%c0_65, %c0_66, %c0_67], %135 {strides = array<i32>} : memref<1x4x16xf32, #tpu.memory_space<vmem>>, vector<1x4x16xf32>,
    return
  }
  func.func @transform_0(%arg0: i32) -> (i32, i32, i32) {
    %c0_i32 = arith.constant 0 : i32
    %c0_i32_0 = arith.constant 0 : i32
    %c0_i32_1 = arith.constant 0 : i32
    return %arg0, %c0_i32, %c0_i32_0 : i32, i32, i32
  }
  func.func @transform_1(%arg0: i32) -> (i32, i32, i32) {
    %c0_i32 = arith.constant 0 : i32
    %c0_i32_0 = arith.constant 0 : i32
    %c0_i32_1 = arith.constant 0 : i32
    return %arg0, %c0_i32, %c0_i32_0 : i32, i32, i32
  }
  func.func @transform_2(%arg0: i32) -> (i32, i32, i32) {
    %c0_i32 = arith.constant 0 : i32
    %c0_i32_0 = arith.constant 0 : i32
    %c0_i32_1 = arith.constant 0 : i32
    %c0_i32_2 = arith.constant 0 : i32
    return %c0_i32, %c0_i32_0, %c0_i32_1 : i32, i32, i32
  }
  func.func @transform_3(%arg0: i32) -> (i32, i32, i32) {
    %c0_i32 = arith.constant 0 : i32
    %c0_i32_0 = arith.constant 0 : i32
    %c0_i32_1 = arith.constant 0 : i32
    %c0_i32_2 = arith.constant 0 : i32
    return %c0_i32, %c0_i32_0, %c0_i32_1 : i32, i32, i32
  }
  func.func @transform_4(%arg0: i32) -> (i32, i32, i32) {
    %c0_i32 = arith.constant 0 : i32
    %c0_i32_0 = arith.constant 0 : i32
    %c0_i32_1 = arith.constant 0 : i32
    %c0_i32_2 = arith.constant 0 : i32
    return %c0_i32, %c0_i32_0, %c0_i32_1 : i32, i32, i32
  }
  func.func @transform_5(%arg0: i32) -> (i32, i32, i32) {
    %c0_i32 = arith.constant 0 : i32
    %c0_i32_0 = arith.constant 0 : i32
    %c0_i32_1 = arith.constant 0 : i32
    %c0_i32_2 = arith.constant 0 : i32
    return %c0_i32, %c0_i32_0, %c0_i32_1 : i32, i32, i32
  }
  func.func @transform_6(%arg0: i32) -> (i32, i32) {
    %c0_i32 = arith.constant 0 : i32
    %c0_i32_0 = arith.constant 0 : i32
    %c0_i32_1 = arith.constant 0 : i32
    return %c0_i32, %c0_i32_0 : i32, i32
  }
  func.func @transform_7(%arg0: i32) -> (i32, i32) {
    %c0_i32 = arith.constant 0 : i32
    %c0_i32_0 = arith.constant 0 : i32
    %c0_i32_1 = arith.constant 0 : i32
    return %c0_i32, %c0_i32_0 : i32, i32
  }
  func.func @transform_8(%arg0: i32) -> (i32, i32) {
    %c0_i32 = arith.constant 0 : i32
    %c0_i32_0 = arith.constant 0 : i32
    %c0_i32_1 = arith.constant 0 : i32
    return %c0_i32, %c0_i32_0 : i32, i32
  }
  func.func @transform_9(%arg0: i32) -> (i32, i32) {
    %c0_i32 = arith.constant 0 : i32
    %c0_i32_0 = arith.constant 0 : i32
    %c0_i32_1 = arith.constant 0 : i32
    return %c0_i32, %c0_i32_0 : i32, i32
  }
  func.func @transform_10(%arg0: i32) -> (i32, i32, i32) {
    %c0_i32 = arith.constant 0 : i32
    %c0_i32_0 = arith.constant 0 : i32
    %c0_i32_1 = arith.constant 0 : i32
    %c0_i32_2 = arith.constant 0 : i32
    return %c0_i32, %c0_i32_0, %c0_i32_1 : i32, i32, i32
  }
  func.func @transform_11(%arg0: i32) -> (i32, i32) {
    %c0_i32 = arith.constant 0 : i32
    %c0_i32_0 = arith.constant 0 : i32
    %c0_i32_1 = arith.constant 0 : i32
    return %c0_i32, %c0_i32_0 : i32, i32
  }
  func.func @transform_12(%arg0: i32) -> (i32, i32, i32) {
    %c0_i32 = arith.constant 0 : i32
    %c0_i32_0 = arith.constant 0 : i32
    %c0_i32_1 = arith.constant 0 : i32
    return %arg0, %c0_i32, %c0_i32_0 : i32, i32, i32
  }
}

</mosaic_0001>

<llo_original>
// kernel: tpu_custom_call.1
$region0: #{tpu_custom_call.1}
  #allocation0 [shape = 'u32[]', space=smem, size = 0x4, offset = 0x4, fixed_abs, tag = 'smem constant byte address 0x4 - core index']
  #allocation1 [shape = 'u32[144,128]{1,0:T(1,128)}', space=vmem, size = 0x12000, scoped, tag = 'internal scratch']
  %s0 = inlined_call_operand.vmem [shape: f32[2,4,16], index: 0, kind: input, shape index: {}]
  %s1 = inlined_call_operand.vmem [shape: f32[2,4,16], index: 1, kind: input, shape index: {}]
  %s2 = inlined_call_operand.vmem [shape: f32[3,32,4], index: 2, kind: input, shape index: {}]
  %s3 = inlined_call_operand.vmem [shape: f32[3,32,4], index: 3, kind: input, shape index: {}]
  %s4 = inlined_call_operand.vmem [shape: f32[3,32,4], index: 4, kind: input, shape index: {}]
  %s5 = inlined_call_operand.vmem [shape: f32[3,32,4], index: 5, kind: input, shape index: {}]
  %s6 = inlined_call_operand.vmem [shape: f32[32,32], index: 6, kind: input, shape index: {}]
  %s7 = inlined_call_operand.vmem [shape: f32[32,32], index: 7, kind: input, shape index: {}]
  %s8 = inlined_call_operand.vmem [shape: f32[32,4], index: 8, kind: input, shape index: {}]
  %s9 = inlined_call_operand.vmem [shape: f32[32,4], index: 9, kind: input, shape index: {}]
  %s10 = inlined_call_operand.vmem [shape: f32[3,4,32], index: 10, kind: input, shape index: {}]
  %s11 = inlined_call_operand.vmem [shape: f32[4,1], index: 11, kind: input, shape index: {}]
  %s12 = inlined_call_operand.hbm [shape: f32[2,4,16], index: 12, kind: output, shape index: {}]
  %s13 = sld [smem:[#allocation0]]
  $region81: #{tpu_custom_call.1} parent=0
    _
  %s15 = ssub.s32 1, %s13
  %s16 = scalar_select 0, %s15, %s13
  $region1: #{tpu_custom_call.1} parent=0
    #allocation2 [shape = 'u8[4096]{0}', space=vmem, size = 0x1000, scoped, tag = 'output window, operand 0']
    #allocation3 [shape = 's32[2]{0}', space=sflag, size = 0x8, scoped, tag = 'scoped memory for tpu_custom_call.1']
    %17 = vsyncpa [#allocation3], 0
    %s18 = scalar_lea.sflag [#allocation3], 1
    %19 = vsyncpa %s18, 0
    loop: start=0, step=1, limit=4
    $region2: #{tpu_custom_call.1} parent=1 // loop_pre_header
      _
    $region3: #{tpu_custom_call.1} parent=1 // loop_header
      %s21 = sphi 0, %s25
      %p22 = scmp.ge.s32.totalorder %s21, 4
      %s31 = sphi 0, %s33
      %s34 = sphi 0, %s31
      %s35 = sphi 0, %s34
      %s51 = sphi 0, %s35
      %s57 = sphi 0, %s59
      %s60 = sphi 0, %s57
      %s61 = sphi 0, %s60
      %s77 = sphi 0, %s61
      %s81 = sphi 0, %s81
      %s83 = sphi 0, %s81
      %s84 = sphi 0, %s83
      %s98 = sphi 0, %s84
      %s102 = sphi 0, %s102
      %s104 = sphi 0, %s102
      %s105 = sphi 0, %s104
      %s119 = sphi 0, %s105
      %s123 = sphi 0, %s123
      %s125 = sphi 0, %s123
      %s126 = sphi 0, %s125
      %s140 = sphi 0, %s126
      %s144 = sphi 0, %s144
      %s146 = sphi 0, %s144
      %s147 = sphi 0, %s146
      %s161 = sphi 0, %s147
      %s165 = sphi 0, %s165
      %s167 = sphi 0, %s165
      %s168 = sphi 0, %s167
      %s182 = sphi 0, %s168
      %s186 = sphi 0, %s186
      %s188 = sphi 0, %s186
      %s189 = sphi 0, %s188
      %s203 = sphi 0, %s189
      %s207 = sphi 0, %s207
      %s209 = sphi 0, %s207
      %s210 = sphi 0, %s209
      %s224 = sphi 0, %s210
      %s228 = sphi 0, %s228
      %s230 = sphi 0, %s228
      %s231 = sphi 0, %s230
      %s245 = sphi 0, %s231
      %s249 = sphi 0, %s249
      %s251 = sphi 0, %s249
      %s252 = sphi 0, %s251
      %s266 = sphi 0, %s252
      %s270 = sphi 0, %s270
      %s272 = sphi 0, %s270
      %s273 = sphi 0, %s272
      %s287 = sphi 0, %s273
      %s293 = sphi 0, %s295
      %s296 = sphi 0, %s293
      %s297 = sphi 0, %s296
      %s313 = sphi 0, %s297
    $region4: #{tpu_custom_call.1} parent=1 // loop_header_branch
      %24 = sbr.rel (%p22) target = $region8
    $region5: #{tpu_custom_call.1} parent=1 // loop_body
      %s26 = ssub.s32 %s21, 1
      %s27 = ssub.s32 %s21, 2
      %s28 = sadd.s32 %s21, 1
      %s29 = ssub.s32 %s21, %s28
      %p30 = scmp.eq.s32.totalorder %s29, 0
      %s32 = sadd.s32 %s31, 1
      %s33 = scalar_select %p30, %s31, %s32
      %p36 = pneg %p30
      %p37 = scmp.eq.s32.totalorder %s21, 1
      %p38 = por %p36, %p37
      %p39 = scmp.ne.s32.totalorder %s31, %s34
      %p40 = scmp.eq.s32.totalorder %s21, 0
      %p41 = por %p39, %p40
      %p42 = scmp.ne.s32.totalorder %s31, %s34
      %p43 = scmp.eq.s32.totalorder %s26, 1
      %p44 = por %p42, %p43
      %p45 = scmp.ne.s32.totalorder %s34, %s35
      %p46 = scmp.eq.s32.totalorder %s26, 0
      %p47 = por %p45, %p46
      %p48 = scmp.ne.s32.totalorder %s34, %s35
      %p49 = scmp.eq.s32.totalorder %s27, 1
      %p50 = por %p48, %p49
      %p52 = scmp.ne.s32.totalorder %s35, %s51
      %p53 = scmp.eq.s32.totalorder %s27, 0
      %p54 = por %p52, %p53
      %s55 = ssub.s32 %s21, %s28
      %p56 = scmp.eq.s32.totalorder %s55, 0
      %s58 = sadd.s32 %s57, 1
      %s59 = scalar_select %p56, %s57, %s58
      %p62 = pneg %p56
      %p63 = scmp.eq.s32.totalorder %s21, 1
      %p64 = por %p62, %p63
      %p65 = scmp.ne.s32.totalorder %s57, %s60
      %p66 = scmp.eq.s32.totalorder %s21, 0
      %p67 = por %p65, %p66
      %p68 = scmp.ne.s32.totalorder %s57, %s60
      %p69 = scmp.eq.s32.totalorder %s26, 1
      %p70 = por %p68, %p69
      %p71 = scmp.ne.s32.totalorder %s60, %s61
      %p72 = scmp.eq.s32.totalorder %s26, 0
      %p73 = por %p71, %p72
      %p74 = scmp.ne.s32.totalorder %s60, %s61
      %p75 = scmp.eq.s32.totalorder %s27, 1
      %p76 = por %p74, %p75
      %p78 = scmp.ne.s32.totalorder %s61, %s77
      %p79 = scmp.eq.s32.totalorder %s27, 0
      %p80 = por %p78, %p79
      %s82 = sadd.s32 %s81, 1
      %p85 = scmp.eq.s32.totalorder %s21, 1
      %p86 = scmp.ne.s32.totalorder %s81, %s83
      %p87 = scmp.eq.s32.totalorder %s21, 0
      %p88 = por %p86, %p87
      %p89 = scmp.ne.s32.totalorder %s81, %s83
      %p90 = scmp.eq.s32.totalorder %s26, 1
      %p91 = por %p89, %p90
      %p92 = scmp.ne.s32.totalorder %s83, %s84
      %p93 = scmp.eq.s32.totalorder %s26, 0
      %p94 = por %p92, %p93
      %p95 = scmp.ne.s32.totalorder %s83, %s84
      %p96 = scmp.eq.s32.totalorder %s27, 1
      %p97 = por %p95, %p96
      %p99 = scmp.ne.s32.totalorder %s84, %s98
      %p100 = scmp.eq.s32.totalorder %s27, 0
      %p101 = por %p99, %p100
      %s103 = sadd.s32 %s102, 1
      %p106 = scmp.eq.s32.totalorder %s21, 1
      %p107 = scmp.ne.s32.totalorder %s102, %s104
      %p108 = scmp.eq.s32.totalorder %s21, 0
      %p109 = por %p107, %p108
      %p110 = scmp.ne.s32.totalorder %s102, %s104
      %p111 = scmp.eq.s32.totalorder %s26, 1
      %p112 = por %p110, %p111
      %p113 = scmp.ne.s32.totalorder %s104, %s105
      %p114 = scmp.eq.s32.totalorder %s26, 0
      %p115 = por %p113, %p114
      %p116 = scmp.ne.s32.totalorder %s104, %s105
      %p117 = scmp.eq.s32.totalorder %s27, 1
      %p118 = por %p116, %p117
      %p120 = scmp.ne.s32.totalorder %s105, %s119
      %p121 = scmp.eq.s32.totalorder %s27, 0
      %p122 = por %p120, %p121
      %s124 = sadd.s32 %s123, 1
      %p127 = scmp.eq.s32.totalorder %s21, 1
      %p128 = scmp.ne.s32.totalorder %s123, %s125
      %p129 = scmp.eq.s32.totalorder %s21, 0
      %p130 = por %p128, %p129
      %p131 = scmp.ne.s32.totalorder %s123, %s125
      %p132 = scmp.eq.s32.totalorder %s26, 1
      %p133 = por %p131, %p132
      %p134 = scmp.ne.s32.totalorder %s125, %s126
      %p135 = scmp.eq.s32.totalorder %s26, 0
      %p136 = por %p134, %p135
      %p137 = scmp.ne.s32.totalorder %s125, %s126
      %p138 = scmp.eq.s32.totalorder %s27, 1
      %p139 = por %p137, %p138
      %p141 = scmp.ne.s32.totalorder %s126, %s140
      %p142 = scmp.eq.s32.totalorder %s27, 0
      %p143 = por %p141, %p142
      %s145 = sadd.s32 %s144, 1
      %p148 = scmp.eq.s32.totalorder %s21, 1
      %p149 = scmp.ne.s32.totalorder %s144, %s146
      %p150 = scmp.eq.s32.totalorder %s21, 0
      %p151 = por %p149, %p150
      %p152 = scmp.ne.s32.totalorder %s144, %s146
      %p153 = scmp.eq.s32.totalorder %s26, 1
      %p154 = por %p152, %p153
      %p155 = scmp.ne.s32.totalorder %s146, %s147
      %p156 = scmp.eq.s32.totalorder %s26, 0
      %p157 = por %p155, %p156
      %p158 = scmp.ne.s32.totalorder %s146, %s147
      %p159 = scmp.eq.s32.totalorder %s27, 1
      %p160 = por %p158, %p159
      %p162 = scmp.ne.s32.totalorder %s147, %s161
      %p163 = scmp.eq.s32.totalorder %s27, 0
      %p164 = por %p162, %p163
      %s166 = sadd.s32 %s165, 1
      %p169 = scmp.eq.s32.totalorder %s21, 1
      %p170 = scmp.ne.s32.totalorder %s165, %s167
      %p171 = scmp.eq.s32.totalorder %s21, 0
      %p172 = por %p170, %p171
      %p173 = scmp.ne.s32.totalorder %s165, %s167
      %p174 = scmp.eq.s32.totalorder %s26, 1
      %p175 = por %p173, %p174
      %p176 = scmp.ne.s32.totalorder %s167, %s168
      %p177 = scmp.eq.s32.totalorder %s26, 0
      %p178 = por %p176, %p177
      %p179 = scmp.ne.s32.totalorder %s167, %s168
      %p180 = scmp.eq.s32.totalorder %s27, 1
      %p181 = por %p179, %p180
      %p183 = scmp.ne.s32.totalorder %s168, %s182
      %p184 = scmp.eq.s32.totalorder %s27, 0
      %p185 = por %p183, %p184
      %s187 = sadd.s32 %s186, 1
      %p190 = scmp.eq.s32.totalorder %s21, 1
      %p191 = scmp.ne.s32.totalorder %s186, %s188
      %p192 = scmp.eq.s32.totalorder %s21, 0
      %p193 = por %p191, %p192
      %p194 = scmp.ne.s32.totalorder %s186, %s188
      %p195 = scmp.eq.s32.totalorder %s26, 1
      %p196 = por %p194, %p195
      %p197 = scmp.ne.s32.totalorder %s188, %s189
      %p198 = scmp.eq.s32.totalorder %s26, 0
      %p199 = por %p197, %p198
      %p200 = scmp.ne.s32.totalorder %s188, %s189
      %p201 = scmp.eq.s32.totalorder %s27, 1
      %p202 = por %p200, %p201
      %p204 = scmp.ne.s32.totalorder %s189, %s203
      %p205 = scmp.eq.s32.totalorder %s27, 0
      %p206 = por %p204, %p205
      %s208 = sadd.s32 %s207, 1
      %p211 = scmp.eq.s32.totalorder %s21, 1
      %p212 = scmp.ne.s32.totalorder %s207, %s209
      %p213 = scmp.eq.s32.totalorder %s21, 0
      %p214 = por %p212, %p213
      %p215 = scmp.ne.s32.totalorder %s207, %s209
      %p216 = scmp.eq.s32.totalorder %s26, 1
      %p217 = por %p215, %p216
      %p218 = scmp.ne.s32.totalorder %s209, %s210
      %p219 = scmp.eq.s32.totalorder %s26, 0
      %p220 = por %p218, %p219
      %p221 = scmp.ne.s32.totalorder %s209, %s210
      %p222 = scmp.eq.s32.totalorder %s27, 1
      %p223 = por %p221, %p222
      %p225 = scmp.ne.s32.totalorder %s210, %s224
      %p226 = scmp.eq.s32.totalorder %s27, 0
      %p227 = por %p225, %p226
      %s229 = sadd.s32 %s228, 1
      %p232 = scmp.eq.s32.totalorder %s21, 1
      %p233 = scmp.ne.s32.totalorder %s228, %s230
      %p234 = scmp.eq.s32.totalorder %s21, 0
      %p235 = por %p233, %p234
      %p236 = scmp.ne.s32.totalorder %s228, %s230
      %p237 = scmp.eq.s32.totalorder %s26, 1
      %p238 = por %p236, %p237
      %p239 = scmp.ne.s32.totalorder %s230, %s231
      %p240 = scmp.eq.s32.totalorder %s26, 0
      %p241 = por %p239, %p240
      %p242 = scmp.ne.s32.totalorder %s230, %s231
      %p243 = scmp.eq.s32.totalorder %s27, 1
      %p244 = por %p242, %p243
      %p246 = scmp.ne.s32.totalorder %s231, %s245
      %p247 = scmp.eq.s32.totalorder %s27, 0
      %p248 = por %p246, %p247
      %s250 = sadd.s32 %s249, 1
      %p253 = scmp.eq.s32.totalorder %s21, 1
      %p254 = scmp.ne.s32.totalorder %s249, %s251
      %p255 = scmp.eq.s32.totalorder %s21, 0
      %p256 = por %p254, %p255
      %p257 = scmp.ne.s32.totalorder %s249, %s251
      %p258 = scmp.eq.s32.totalorder %s26, 1
      %p259 = por %p257, %p258
      %p260 = scmp.ne.s32.totalorder %s251, %s252
      %p261 = scmp.eq.s32.totalorder %s26, 0
      %p262 = por %p260, %p261
      %p263 = scmp.ne.s32.totalorder %s251, %s252
      %p264 = scmp.eq.s32.totalorder %s27, 1
      %p265 = por %p263, %p264
      %p267 = scmp.ne.s32.totalorder %s252, %s266
      %p268 = scmp.eq.s32.totalorder %s27, 0
      %p269 = por %p267, %p268
      %s271 = sadd.s32 %s270, 1
      %p274 = scmp.eq.s32.totalorder %s21, 1
      %p275 = scmp.ne.s32.totalorder %s270, %s272
      %p276 = scmp.eq.s32.totalorder %s21, 0
      %p277 = por %p275, %p276
      %p278 = scmp.ne.s32.totalorder %s270, %s272
      %p279 = scmp.eq.s32.totalorder %s26, 1
      %p280 = por %p278, %p279
      %p281 = scmp.ne.s32.totalorder %s272, %s273
      %p282 = scmp.eq.s32.totalorder %s26, 0
      %p283 = por %p281, %p282
      %p284 = scmp.ne.s32.totalorder %s272, %s273
      %p285 = scmp.eq.s32.totalorder %s27, 1
      %p286 = por %p284, %p285
      %p288 = scmp.ne.s32.totalorder %s273, %s287
      %p289 = scmp.eq.s32.totalorder %s27, 0
      %p290 = por %p288, %p289
      %s291 = ssub.s32 %s21, %s28
      %p292 = scmp.eq.s32.totalorder %s291, 0
      %s294 = sadd.s32 %s293, 1
      %s295 = scalar_select %p292, %s293, %s294
      %p298 = pneg %p292
      %p299 = scmp.eq.s32.totalorder %s21, 1
      %p300 = por %p298, %p299
      %p301 = scmp.ne.s32.totalorder %s293, %s296
      %p302 = scmp.eq.s32.totalorder %s21, 0
      %p303 = por %p301, %p302
      %p304 = scmp.ne.s32.totalorder %s293, %s296
      %p305 = scmp.eq.s32.totalorder %s26, 1
      %p306 = por %p304, %p305
      %p307 = scmp.ne.s32.totalorder %s296, %s297
      %p308 = scmp.eq.s32.totalorder %s26, 0
      %p309 = por %p307, %p308
      %p310 = scmp.ne.s32.totalorder %s296, %s297
      %p311 = scmp.eq.s32.totalorder %s27, 1
      %p312 = por %p310, %p311
      %p314 = scmp.ne.s32.totalorder %s297, %s313
      %p315 = scmp.eq.s32.totalorder %s27, 0
      %p316 = por %p314, %p315
      %p317 = scmp.le.s32.totalorder 1, %s21
      %p318 = scmp.lt.s32.totalorder %s21, 3
      %p319 = pnand %p317, %p318
      %p320 = pneg %p319
      // Predicated region
      $region9: #{tpu_custom_call.1} parent=5 // pred_check
        _
      $region10: #{tpu_custom_call.1} parent=5 // pred_check_branch
        %322 = sbr.rel (%p319) target = $region12
      $region11: #{tpu_custom_call.1} parent=5 // pred_region
        %s323 = ssub.s32 %s21, 1
        // Predicated region
        $region13: #{tpu_custom_call.1} parent=11 // pred_check
          %p324 = pneg %p94
        $region14: #{tpu_custom_call.1} parent=11 // pred_check_branch
          %326 = sbr.rel (%p324) target = $region16
        $region15: #{tpu_custom_call.1} parent=11 // pred_region
          _
        $region16: #{tpu_custom_call.1} parent=11 // pred_fallthru
          _
        // Predicated region
        $region17: #{tpu_custom_call.1} parent=11 // pred_check
          %p327 = pneg %p115
        $region18: #{tpu_custom_call.1} parent=11 // pred_check_branch
          %329 = sbr.rel (%p327) target = $region20
        $region19: #{tpu_custom_call.1} parent=11 // pred_region
          _
        $region20: #{tpu_custom_call.1} parent=11 // pred_fallthru
          _
        // Predicated region
        $region21: #{tpu_custom_call.1} parent=11 // pred_check
          %p330 = pneg %p136
        $region22: #{tpu_custom_call.1} parent=11 // pred_check_branch
          %332 = sbr.rel (%p330) target = $region24
        $region23: #{tpu_custom_call.1} parent=11 // pred_region
          _
        $region24: #{tpu_custom_call.1} parent=11 // pred_fallthru
          _
        // Predicated region
        $region25: #{tpu_custom_call.1} parent=11 // pred_check
          %p333 = pneg %p157
        $region26: #{tpu_custom_call.1} parent=11 // pred_check_branch
          %335 = sbr.rel (%p333) target = $region28
        $region27: #{tpu_custom_call.1} parent=11 // pred_region
          _
        $region28: #{tpu_custom_call.1} parent=11 // pred_fallthru
          _
        // Predicated region
        $region29: #{tpu_custom_call.1} parent=11 // pred_check
          %p336 = pneg %p178
        $region30: #{tpu_custom_call.1} parent=11 // pred_check_branch
          %338 = sbr.rel (%p336) target = $region32
        $region31: #{tpu_custom_call.1} parent=11 // pred_region
          _
        $region32: #{tpu_custom_call.1} parent=11 // pred_fallthru
          _
        // Predicated region
        $region33: #{tpu_custom_call.1} parent=11 // pred_check
          %p339 = pneg %p199
        $region34: #{tpu_custom_call.1} parent=11 // pred_check_branch
          %341 = sbr.rel (%p339) target = $region36
        $region35: #{tpu_custom_call.1} parent=11 // pred_region
          _
        $region36: #{tpu_custom_call.1} parent=11 // pred_fallthru
          _
        // Predicated region
        $region37: #{tpu_custom_call.1} parent=11 // pred_check
          %p342 = pneg %p220
        $region38: #{tpu_custom_call.1} parent=11 // pred_check_branch
          %344 = sbr.rel (%p342) target = $region40
        $region39: #{tpu_custom_call.1} parent=11 // pred_region
          _
        $region40: #{tpu_custom_call.1} parent=11 // pred_fallthru
          _
        // Predicated region
        $region41: #{tpu_custom_call.1} parent=11 // pred_check
          %p345 = pneg %p241
        $region42: #{tpu_custom_call.1} parent=11 // pred_check_branch
          %347 = sbr.rel (%p345) target = $region44
        $region43: #{tpu_custom_call.1} parent=11 // pred_region
          _
        $region44: #{tpu_custom_call.1} parent=11 // pred_fallthru
          _
        // Predicated region
        $region45: #{tpu_custom_call.1} parent=11 // pred_check
          %p348 = pneg %p262
        $region46: #{tpu_custom_call.1} parent=11 // pred_check_branch
          %350 = sbr.rel (%p348) target = $region48
        $region47: #{tpu_custom_call.1} parent=11 // pred_region
          _
        $region48: #{tpu_custom_call.1} parent=11 // pred_fallthru
          _
        // Predicated region
        $region49: #{tpu_custom_call.1} parent=11 // pred_check
          %p351 = pneg %p283
        $region50: #{tpu_custom_call.1} parent=11 // pred_check_branch
          %353 = sbr.rel (%p351) target = $region52
        $region51: #{tpu_custom_call.1} parent=11 // pred_region
          _
        $region52: #{tpu_custom_call.1} parent=11 // pred_fallthru
          _
      $region12: #{tpu_custom_call.1} parent=5 // pred_fallthru
        _
      %p354 = scmp.lt.s32.totalorder %s21, 2
      // Predicated region
      $region53: #{tpu_custom_call.1} parent=5 // pred_check
        %p355 = pneg %p354
      $region54: #{tpu_custom_call.1} parent=5 // pred_check_branch
        %357 = sbr.rel (%p355) target = $region56
      $region55: #{tpu_custom_call.1} parent=5 // pred_region
        // Predicated region
        $region57: #{tpu_custom_call.1} parent=55 // pred_check
          %p358 = pneg %p41
        $region58: #{tpu_custom_call.1} parent=55 // pred_check_branch
          %360 = sbr.rel (%p358) target = $region60
        $region59: #{tpu_custom_call.1} parent=55 // pred_region
          %p361 = scmp.lt.s32.totalorder %s21, 1
          %s362 = scalar_select %p361, %s21, 1
          %s363 = smul.addr %s362, 4
          %s364 = scalar_lea.vmem %s0, %s363
        $region60: #{tpu_custom_call.1} parent=55 // pred_fallthru
          _
        // Predicated region
        $region61: #{tpu_custom_call.1} parent=55 // pred_check
          %p365 = pneg %p67
        $region62: #{tpu_custom_call.1} parent=55 // pred_check_branch
          %367 = sbr.rel (%p365) target = $region64
        $region63: #{tpu_custom_call.1} parent=55 // pred_region
          %p368 = scmp.lt.s32.totalorder %s21, 1
          %s369 = scalar_select %p368, %s21, 1
          %s370 = smul.addr %s369, 4
          %s371 = scalar_lea.vmem %s1, %s370
        $region64: #{tpu_custom_call.1} parent=55 // pred_fallthru
          _
      $region56: #{tpu_custom_call.1} parent=5 // pred_fallthru
        _
      %p372 = scmp.le.s32.totalorder 1, %s21
      %p373 = scmp.lt.s32.totalorder %s21, 3
      %p374 = pnand %p372, %p373
      %p375 = pneg %p374
      // Predicated region
      $region65: #{tpu_custom_call.1} parent=5 // pred_check
        _
      $region66: #{tpu_custom_call.1} parent=5 // pred_check_branch
        %377 = sbr.rel (%p374) target = $region68
      $region67: #{tpu_custom_call.1} parent=5 // pred_region
        %s378 = ssub.s32 %s21, 1
        %p379 = scmp.lt.s32.totalorder %s26, 1
        %s380 = scalar_select %p379, %s26, 1
        %s381 = smul.addr %s380, 4
        %s382 = scalar_lea.vmem %s0, %s381
        %p383 = pneg %p47
        %p384 = pneg %p44
        %p385 = scmp.lt.s32.totalorder %s26, 1
        %s386 = scalar_select %p385, %s26, 1
        %s387 = smul.addr %s386, 4
        %s388 = scalar_lea.vmem %s1, %s387
        %p389 = pneg %p73
        %p390 = pneg %p70
        %p391 = pneg %p94
        %p392 = pneg %p91
        %p393 = pneg %p115
        %p394 = pneg %p112
        %p395 = pneg %p136
        %p396 = pneg %p133
        %p397 = pneg %p157
        %p398 = pneg %p154
        %p399 = pneg %p178
        %p400 = pneg %p175
        %p401 = pneg %p199
        %p402 = pneg %p196
        %p403 = pneg %p220
        %p404 = pneg %p217
        %p405 = pneg %p241
        %p406 = pneg %p238
        %p407 = pneg %p262
        %p408 = pneg %p259
        %p409 = pneg %p283
        %p410 = pneg %p280
        %p411 = pneg %p309
        %p412 = pneg %p306
        %s413 = sand.u32 %s296, 1
        %s414 = scalar_lea.sflag [#allocation3], %s413
        %s415 = sand.u32 %s296, 1
        %s416 = smul.addr %s415, 4
        %s417 = scalar_lea.vmem [#allocation2], %s416
        %p418 = scmp.lt.s32.totalorder %s26, 1
        %s419 = scalar_select %p418, %s26, 1
        %s420 = smul.addr %s419, 4
        %s421 = scalar_lea.vmem %s0, %s420
        %p422 = scmp.lt.s32.totalorder %s26, 1
        %s423 = scalar_select %p422, %s26, 1
        %s424 = smul.addr %s423, 4
        %s425 = scalar_lea.vmem %s1, %s424
        %v426 = vld [vmem:[%s421] sm:$0xf]
        %v427 = vld [vmem:[%s425] sm:$0xf]
        %v428 = vlaneseq
        %v429 = vand.u32 %v428, 127
        %vm430 = vcmp.eq.s32.totalorder %v429, 0
        %vm431 = vcmp.eq.s32.totalorder %v429, 15
        %vm432 = vcmask 1047680
        %433 = vrot.lane.b32.xlu0 %v426, 16
        %v434 = vpop.permute.xlu0 %433
        %v435 = vsel %vm432, %v434, %v426
        %436 = vrot.lane.b32.xlu0 %v435, 16
        %v437 = vpop.permute.xlu0 %436
        %v438 = vsel %vm432, %v437, %v426
        %v439 = vsel %vm430, 1, 0
        %vm440 = vcmp.eq.s32.totalorder %v439, 1
        %442 = vrot.lane.b32.xlu0 %v438, 113
        %v443 = vpop.permute.xlu0 %442
        %v445 = vsel %vm440, 0.0, %v443
        %v446 = vsel %vm431, 1, 0
        %vm447 = vcmp.eq.s32.totalorder %v446, 1
        %448 = vrot.lane.b32.xlu0 %v438, 127
        %v449 = vpop.permute.xlu0 %448
        %v451 = vsel %vm447, 0.0, %v449
        %452 = vrot.lane.b32.xlu0 %v427, 16
        %v453 = vpop.permute.xlu0 %452
        %v454 = vsel %vm432, %v453, %v427
        %455 = vrot.lane.b32.xlu0 %v454, 16
        %v456 = vpop.permute.xlu0 %455
        %v457 = vsel %vm432, %v456, %v427
        %459 = vrot.lane.b32.xlu0 %v457, 113
        %v460 = vpop.permute.xlu0 %459
        %v462 = vsel %vm440, 0.0, %v460
        %463 = vrot.lane.b32.xlu0 %v457, 127
        %v464 = vpop.permute.xlu0 %463
        %v466 = vsel %vm447, 0.0, %v464
        %v467 = vld [vmem:[%s2] sm:$0xff]
        %v468 = vld [vmem:[%s2 + $0x8] sm:$0xff]
        %v469 = vld [vmem:[%s2 + $0x10] sm:$0xff]
        %v470 = vld [vmem:[%s2 + $0x18] sm:$0xff]
        %v471 = vld [vmem:[%s2 + $0x20] sm:$0xff]
        %v472 = vld [vmem:[%s2 + $0x28] sm:$0xff]
        %v473 = vld [vmem:[%s2 + $0x30] sm:$0xff]
        %v474 = vld [vmem:[%s2 + $0x38] sm:$0xff]
        %v475 = vld [vmem:[%s2 + $0x40] sm:$0xff]
        %v476 = vld [vmem:[%s2 + $0x48] sm:$0xff]
        %v477 = vld [vmem:[%s2 + $0x50] sm:$0xff]
        %v478 = vld [vmem:[%s2 + $0x58] sm:$0xff]
        %vm479 = vcmask 31744
        %v481 = vsel %vm479, %v471, 0
        %v484 = vsel %vm479, %v472, 0
        %v487 = vsel %vm479, %v473, 0
        %v490 = vsel %vm479, %v474, 0
        %vm492 = vcmask 1043456
        %v494 = vsel %vm492, %v426, 0
        %496 = vmatprep.subr.mxu0 0.0
        %497 = vmatpush1.msra.mxu0 %v494
        %498 = vmatprep.subr.mxu0 0.0
        %499 = vmatpush1.msra.mxu0 0.0
        %500 = vmatprep.subr.mxu0 0.0
        %501 = vmatpush1.msra.mxu0 0.0
        %502 = vmatprep.subr.mxu0 0.0
        %503 = vmatpush1.msra.mxu0 0.0
        %504 = vmatprep.subr.mxu0 0.0
        %505 = vmatpush1.msra.mxu0 0.0
        %506 = vmatprep.subr.mxu0 0.0
        %507 = vmatpush1.msra.mxu0 0.0
        %508 = vmatprep.subr.mxu0 0.0
        %509 = vmatpush1.msra.mxu0 0.0
        %510 = vmatprep.subr.mxu0 0.0
        %511 = vmatpush1.msra.mxu0 0.0
        %512 = vmatprep.subr.mxu0 0.0
        %513 = vmatpush1.msra.mxu0 0.0
        %514 = vmatprep.subr.mxu0 0.0
        %515 = vmatpush1.msra.mxu0 0.0
        %516 = vmatprep.subr.mxu0 0.0
        %517 = vmatpush1.msra.mxu0 0.0
        %518 = vmatprep.subr.mxu0 0.0
        %519 = vmatpush1.msra.mxu0 0.0
        %520 = vmatprep.subr.mxu0 0.0
        %521 = vmatpush1.msra.mxu0 0.0
        %522 = vmatprep.subr.mxu0 0.0
        %523 = vmatpush1.msra.mxu0 0.0
        %524 = vmatprep.subr.mxu0 0.0
        %525 = vmatpush1.msra.mxu0 0.0
        %526 = vmatprep.subr.mxu0 0.0
        %527 = vmatpush1.msra.mxu0 0.0
        %528 = vmatprep.subr.mxu0 0.0
        %529 = vmatpush1.msra.mxu0 0.0
        %530 = vmatprep.subr.mxu0 0.0
        %531 = vmatpush1.msra.mxu0 0.0
        %532 = vmatprep.subr.mxu0 0.0
        %533 = vmatpush1.msra.mxu0 0.0
        %534 = vmatprep.subr.mxu0 0.0
        %535 = vmatpush1.msra.mxu0 0.0
        %536 = vmatprep.subr.mxu0 0.0
        %537 = vmatpush1.msra.mxu0 0.0
        %538 = vmatprep.subr.mxu0 0.0
        %539 = vmatpush1.msra.mxu0 0.0
        %540 = vmatprep.subr.mxu0 0.0
        %541 = vmatpush1.msra.mxu0 0.0
        %542 = vmatprep.subr.mxu0 0.0
        %543 = vmatpush1.msra.mxu0 0.0
        %544 = vmatprep.subr.mxu0 0.0
        %545 = vmatpush1.msra.mxu0 0.0
        %546 = vmatprep.subr.mxu0 0.0
        %547 = vmatpush1.msra.mxu0 0.0
        %548 = vmatprep.subr.mxu0 0.0
        %549 = vmatpush1.msra.mxu0 0.0
        %550 = vmatprep.subr.mxu0 0.0
        %551 = vmatpush1.msra.mxu0 0.0
        %552 = vmatprep.subr.mxu0 0.0
        %553 = vmatpush1.msra.mxu0 0.0
        %554 = vmatprep.subr.mxu0 0.0
        %555 = vmatpush1.msra.mxu0 0.0
        %556 = vmatprep.subr.mxu0 0.0
        %557 = vmatpush1.msra.mxu0 0.0
        %558 = vmatprep.subr.mxu0 0.0
        %559 = vmatpush1.msra.mxu0 0.0
        %560 = vmatprep.mubr.f32.mxu0 0.0
        %561 = vmatmul.mubr.f32.gmra.mrb[0].mxu0 %v481
        %v562 = vpop.f32.mrb[0].mxu0
        %v563 = vadd.f32 0.0, %v562
        %v564 = vpop.f32.mrb[0].mxu0
        %565 = vmatprep.mubr.f32.mxu0 0.0
        %566 = vmatmul.mubr.f32.gmra.mrb[0].mxu0 %v484
        %v567 = vpop.f32.mrb[0].mxu0
        %v568 = vadd.f32 0.0, %v567
        %v569 = vpop.f32.mrb[0].mxu0
        %570 = vmatprep.mubr.f32.mxu0 0.0
        %571 = vmatmul.mubr.f32.gmra.mrb[0].mxu0 %v487
        %v572 = vpop.f32.mrb[0].mxu0
        %v573 = vadd.f32 0.0, %v572
        %v574 = vpop.f32.mrb[0].mxu0
        %575 = vmatprep.mubr.f32.mxu0 0.0
        %576 = vmatmul.mubr.f32.gmra.mrb[0].mxu0 %v490
        %v577 = vpop.f32.mrb[0].mxu0
        %v578 = vadd.f32 0.0, %v577
        %v579 = vpop.f32.mrb[0].mxu0
        %580 = vdwg.mxu0
        %v582 = vsel %vm479, %v467, 0
        %v585 = vsel %vm479, %v468, 0
        %v588 = vsel %vm479, %v469, 0
        %v591 = vsel %vm479, %v470, 0
        %v594 = vsel %vm492, %v445, 0
        %596 = vmatprep.subr.mxu0 0.0
        %597 = vmatpush1.msra.mxu0 %v594
        %598 = vmatprep.subr.mxu0 0.0
        %599 = vmatpush1.msra.mxu0 0.0
        %600 = vmatprep.subr.mxu0 0.0
        %601 = vmatpush1.msra.mxu0 0.0
        %602 = vmatprep.subr.mxu0 0.0
        %603 = vmatpush1.msra.mxu0 0.0
        %604 = vmatprep.subr.mxu0 0.0
        %605 = vmatpush1.msra.mxu0 0.0
        %606 = vmatprep.subr.mxu0 0.0
        %607 = vmatpush1.msra.mxu0 0.0
        %608 = vmatprep.subr.mxu0 0.0
        %609 = vmatpush1.msra.mxu0 0.0
        %610 = vmatprep.subr.mxu0 0.0
        %611 = vmatpush1.msra.mxu0 0.0
        %612 = vmatprep.subr.mxu0 0.0
        %613 = vmatpush1.msra.mxu0 0.0
        %614 = vmatprep.subr.mxu0 0.0
        %615 = vmatpush1.msra.mxu0 0.0
        %616 = vmatprep.subr.mxu0 0.0
        %617 = vmatpush1.msra.mxu0 0.0
        %618 = vmatprep.subr.mxu0 0.0
        %619 = vmatpush1.msra.mxu0 0.0
        %620 = vmatprep.subr.mxu0 0.0
        %621 = vmatpush1.msra.mxu0 0.0
        %622 = vmatprep.subr.mxu0 0.0
        %623 = vmatpush1.msra.mxu0 0.0
        %624 = vmatprep.subr.mxu0 0.0
        %625 = vmatpush1.msra.mxu0 0.0
        %626 = vmatprep.subr.mxu0 0.0
        %627 = vmatpush1.msra.mxu0 0.0
        %628 = vmatprep.subr.mxu0 0.0
        %629 = vmatpush1.msra.mxu0 0.0
        %630 = vmatprep.subr.mxu0 0.0
        %631 = vmatpush1.msra.mxu0 0.0
        %632 = vmatprep.subr.mxu0 0.0
        %633 = vmatpush1.msra.mxu0 0.0
        %634 = vmatprep.subr.mxu0 0.0
        %635 = vmatpush1.msra.mxu0 0.0
        %636 = vmatprep.subr.mxu0 0.0
        %637 = vmatpush1.msra.mxu0 0.0
        %638 = vmatprep.subr.mxu0 0.0
        %639 = vmatpush1.msra.mxu0 0.0
        %640 = vmatprep.subr.mxu0 0.0
        %641 = vmatpush1.msra.mxu0 0.0
        %642 = vmatprep.subr.mxu0 0.0
        %643 = vmatpush1.msra.mxu0 0.0
        %644 = vmatprep.subr.mxu0 0.0
        %645 = vmatpush1.msra.mxu0 0.0
        %646 = vmatprep.subr.mxu0 0.0
        %647 = vmatpush1.msra.mxu0 0.0
        %648 = vmatprep.subr.mxu0 0.0
        %649 = vmatpush1.msra.mxu0 0.0
        %650 = vmatprep.subr.mxu0 0.0
        %651 = vmatpush1.msra.mxu0 0.0
        %652 = vmatprep.subr.mxu0 0.0
        %653 = vmatpush1.msra.mxu0 0.0
        %654 = vmatprep.subr.mxu0 0.0
        %655 = vmatpush1.msra.mxu0 0.0
        %656 = vmatprep.subr.mxu0 0.0
        %657 = vmatpush1.msra.mxu0 0.0
        %658 = vmatprep.subr.mxu0 0.0
        %659 = vmatpush1.msra.mxu0 0.0
        %660 = vmatprep.mubr.f32.mxu0 0.0
        %661 = vmatmul.mubr.f32.gmra.mrb[0].mxu0 %v582
        %v662 = vpop.f32.mrb[0].mxu0
        %v663 = vadd.f32 %v563, %v662
        %v664 = vpop.f32.mrb[0].mxu0
        %665 = vmatprep.mubr.f32.mxu0 0.0
        %666 = vmatmul.mubr.f32.gmra.mrb[0].mxu0 %v585
        %v667 = vpop.f32.mrb[0].mxu0
        %v668 = vadd.f32 %v568, %v667
        %v669 = vpop.f32.mrb[0].mxu0
        %670 = vmatprep.mubr.f32.mxu0 0.0
        %671 = vmatmul.mubr.f32.gmra.mrb[0].mxu0 %v588
        %v672 = vpop.f32.mrb[0].mxu0
        %v673 = vadd.f32 %v573, %v672
        %v674 = vpop.f32.mrb[0].mxu0
        %675 = vmatprep.mubr.f32.mxu0 0.0
        %676 = vmatmul.mubr.f32.gmra.mrb[0].mxu0 %v591
        %v677 = vpop.f32.mrb[0].mxu0
        %v678 = vadd.f32 %v578, %v677
        %v679 = vpop.f32.mrb[0].mxu0
        %680 = vdwg.mxu0
        %v682 = vsel %vm479, %v475, 0
        %v685 = vsel %vm479, %v476, 0
        %v688 = vsel %vm479, %v477, 0
        %v691 = vsel %vm479, %v478, 0
        %v694 = vsel %vm492, %v451, 0
        %696 = vmatprep.subr.mxu0 0.0
        %697 = vmatpush1.msra.mxu0 %v694
        %698 = vmatprep.subr.mxu0 0.0
        %699 = vmatpush1.msra.mxu0 0.0
        %700 = vmatprep.subr.mxu0 0.0
        %701 = vmatpush1.msra.mxu0 0.0
        %702 = vmatprep.subr.mxu0 0.0
        %703 = vmatpush1.msra.mxu0 0.0
        %704 = vmatprep.subr.mxu0 0.0
        %705 = vmatpush1.msra.mxu0 0.0
        %706 = vmatprep.subr.mxu0 0.0
        %707 = vmatpush1.msra.mxu0 0.0
        %708 = vmatprep.subr.mxu0 0.0
        %709 = vmatpush1.msra.mxu0 0.0
        %710 = vmatprep.subr.mxu0 0.0
        %711 = vmatpush1.msra.mxu0 0.0
        %712 = vmatprep.subr.mxu0 0.0
        %713 = vmatpush1.msra.mxu0 0.0
        %714 = vmatprep.subr.mxu0 0.0
        %715 = vmatpush1.msra.mxu0 0.0
        %716 = vmatprep.subr.mxu0 0.0
        %717 = vmatpush1.msra.mxu0 0.0
        %718 = vmatprep.subr.mxu0 0.0
        %719 = vmatpush1.msra.mxu0 0.0
        %720 = vmatprep.subr.mxu0 0.0
        %721 = vmatpush1.msra.mxu0 0.0
        %722 = vmatprep.subr.mxu0 0.0
        %723 = vmatpush1.msra.mxu0 0.0
        %724 = vmatprep.subr.mxu0 0.0
        %725 = vmatpush1.msra.mxu0 0.0
        %726 = vmatprep.subr.mxu0 0.0
        %727 = vmatpush1.msra.mxu0 0.0
        %728 = vmatprep.subr.mxu0 0.0
        %729 = vmatpush1.msra.mxu0 0.0
        %730 = vmatprep.subr.mxu0 0.0
        %731 = vmatpush1.msra.mxu0 0.0
        %732 = vmatprep.subr.mxu0 0.0
        %733 = vmatpush1.msra.mxu0 0.0
        %734 = vmatprep.subr.mxu0 0.0
        %735 = vmatpush1.msra.mxu0 0.0
        %736 = vmatprep.subr.mxu0 0.0
        %737 = vmatpush1.msra.mxu0 0.0
        %738 = vmatprep.subr.mxu0 0.0
        %739 = vmatpush1.msra.mxu0 0.0
        %740 = vmatprep.subr.mxu0 0.0
        %741 = vmatpush1.msra.mxu0 0.0
        %742 = vmatprep.subr.mxu0 0.0
        %743 = vmatpush1.msra.mxu0 0.0
        %744 = vmatprep.subr.mxu0 0.0
        %745 = vmatpush1.msra.mxu0 0.0
        %746 = vmatprep.subr.mxu0 0.0
        %747 = vmatpush1.msra.mxu0 0.0
        %748 = vmatprep.subr.mxu0 0.0
        %749 = vmatpush1.msra.mxu0 0.0
        %750 = vmatprep.subr.mxu0 0.0
        %751 = vmatpush1.msra.mxu0 0.0
        %752 = vmatprep.subr.mxu0 0.0
        %753 = vmatpush1.msra.mxu0 0.0
        %754 = vmatprep.subr.mxu0 0.0
        %755 = vmatpush1.msra.mxu0 0.0
        %756 = vmatprep.subr.mxu0 0.0
        %757 = vmatpush1.msra.mxu0 0.0
        %758 = vmatprep.subr.mxu0 0.0
        %759 = vmatpush1.msra.mxu0 0.0
        %760 = vmatprep.mubr.f32.mxu0 0.0
        %761 = vmatmul.mubr.f32.gmra.mrb[0].mxu0 %v682
        %v762 = vpop.f32.mrb[0].mxu0
        %v763 = vadd.f32 0.0, %v762
        %v764 = vpop.f32.mrb[0].mxu0
        %765 = vmatprep.mubr.f32.mxu0 0.0
        %766 = vmatmul.mubr.f32.gmra.mrb[0].mxu0 %v685
        %v767 = vpop.f32.mrb[0].mxu0
        %v768 = vadd.f32 0.0, %v767
        %v769 = vpop.f32.mrb[0].mxu0
        %770 = vmatprep.mubr.f32.mxu0 0.0
        %771 = vmatmul.mubr.f32.gmra.mrb[0].mxu0 %v688
        %v772 = vpop.f32.mrb[0].mxu0
        %v773 = vadd.f32 0.0, %v772
        %v774 = vpop.f32.mrb[0].mxu0
        %775 = vmatprep.mubr.f32.mxu0 0.0
        %776 = vmatmul.mubr.f32.gmra.mrb[0].mxu0 %v691
        %v777 = vpop.f32.mrb[0].mxu0
        %v778 = vadd.f32 0.0, %v777
        %v779 = vpop.f32.mrb[0].mxu0
        %780 = vdwg.mxu0
        %v781 = vadd.f32 %v663, %v763
        %v782 = vadd.f32 %v668, %v768
        %v783 = vadd.f32 %v673, %v773
        %v784 = vadd.f32 %v678, %v778
        %v785 = vld [vmem:[%s4] sm:$0xff]
        %v786 = vld [vmem:[%s4 + $0x8] sm:$0xff]
        %v787 = vld [vmem:[%s4 + $0x10] sm:$0xff]
        %v788 = vld [vmem:[%s4 + $0x18] sm:$0xff]
        %v789 = vld [vmem:[%s4 + $0x20] sm:$0xff]
        %v790 = vld [vmem:[%s4 + $0x28] sm:$0xff]
        %v791 = vld [vmem:[%s4 + $0x30] sm:$0xff]
        %v792 = vld [vmem:[%s4 + $0x38] sm:$0xff]
        %v793 = vld [vmem:[%s4 + $0x40] sm:$0xff]
        %v794 = vld [vmem:[%s4 + $0x48] sm:$0xff]
        %v795 = vld [vmem:[%s4 + $0x50] sm:$0xff]
        %v796 = vld [vmem:[%s4 + $0x58] sm:$0xff]
        %v798 = vsel %vm479, %v789, 0
        %v801 = vsel %vm479, %v790, 0
        %v804 = vsel %vm479, %v791, 0
        %v807 = vsel %vm479, %v792, 0
        %v810 = vsel %vm492, %v427, 0
        %812 = vmatprep.subr.mxu0 0.0
        %813 = vmatpush1.msra.mxu0 %v810
        %814 = vmatprep.subr.mxu0 0.0
        %815 = vmatpush1.msra.mxu0 0.0
        %816 = vmatprep.subr.mxu0 0.0
        %817 = vmatpush1.msra.mxu0 0.0
        %818 = vmatprep.subr.mxu0 0.0
        %819 = vmatpush1.msra.mxu0 0.0
        %820 = vmatprep.subr.mxu0 0.0
        %821 = vmatpush1.msra.mxu0 0.0
        %822 = vmatprep.subr.mxu0 0.0
        %823 = vmatpush1.msra.mxu0 0.0
        %824 = vmatprep.subr.mxu0 0.0
        %825 = vmatpush1.msra.mxu0 0.0
        %826 = vmatprep.subr.mxu0 0.0
        %827 = vmatpush1.msra.mxu0 0.0
        %828 = vmatprep.subr.mxu0 0.0
        %829 = vmatpush1.msra.mxu0 0.0
        %830 = vmatprep.subr.mxu0 0.0
        %831 = vmatpush1.msra.mxu0 0.0
        %832 = vmatprep.subr.mxu0 0.0
        %833 = vmatpush1.msra.mxu0 0.0
        %834 = vmatprep.subr.mxu0 0.0
        %835 = vmatpush1.msra.mxu0 0.0
        %836 = vmatprep.subr.mxu0 0.0
        %837 = vmatpush1.msra.mxu0 0.0
        %838 = vmatprep.subr.mxu0 0.0
        %839 = vmatpush1.msra.mxu0 0.0
        %840 = vmatprep.subr.mxu0 0.0
        %841 = vmatpush1.msra.mxu0 0.0
        %842 = vmatprep.subr.mxu0 0.0
        %843 = vmatpush1.msra.mxu0 0.0
        %844 = vmatprep.subr.mxu0 0.0
        %845 = vmatpush1.msra.mxu0 0.0
        %846 = vmatprep.subr.mxu0 0.0
        %847 = vmatpush1.msra.mxu0 0.0
        %848 = vmatprep.subr.mxu0 0.0
        %849 = vmatpush1.msra.mxu0 0.0
        %850 = vmatprep.subr.mxu0 0.0
        %851 = vmatpush1.msra.mxu0 0.0
        %852 = vmatprep.subr.mxu0 0.0
        %853 = vmatpush1.msra.mxu0 0.0
        %854 = vmatprep.subr.mxu0 0.0
        %855 = vmatpush1.msra.mxu0 0.0
        %856 = vmatprep.subr.mxu0 0.0
        %857 = vmatpush1.msra.mxu0 0.0
        %858 = vmatprep.subr.mxu0 0.0
        %859 = vmatpush1.msra.mxu0 0.0
        %860 = vmatprep.subr.mxu0 0.0
        %861 = vmatpush1.msra.mxu0 0.0
        %862 = vmatprep.subr.mxu0 0.0
        %863 = vmatpush1.msra.mxu0 0.0
        %864 = vmatprep.subr.mxu0 0.0
        %865 = vmatpush1.msra.mxu0 0.0
        %866 = vmatprep.subr.mxu0 0.0
        %867 = vmatpush1.msra.mxu0 0.0
        %868 = vmatprep.subr.mxu0 0.0
        %869 = vmatpush1.msra.mxu0 0.0
        %870 = vmatprep.subr.mxu0 0.0
        %871 = vmatpush1.msra.mxu0 0.0
        %872 = vmatprep.subr.mxu0 0.0
        %873 = vmatpush1.msra.mxu0 0.0
        %874 = vmatprep.subr.mxu0 0.0
        %875 = vmatpush1.msra.mxu0 0.0
        %876 = vmatprep.mubr.f32.mxu0 0.0
        %877 = vmatmul.mubr.f32.gmra.mrb[0].mxu0 %v798
        %v878 = vpop.f32.mrb[0].mxu0
        %v879 = vadd.f32 0.0, %v878
        %v880 = vpop.f32.mrb[0].mxu0
        %881 = vmatprep.mubr.f32.mxu0 0.0
        %882 = vmatmul.mubr.f32.gmra.mrb[0].mxu0 %v801
        %v883 = vpop.f32.mrb[0].mxu0
        %v884 = vadd.f32 0.0, %v883
        %v885 = vpop.f32.mrb[0].mxu0
        %886 = vmatprep.mubr.f32.mxu0 0.0
        %887 = vmatmul.mubr.f32.gmra.mrb[0].mxu0 %v804
        %v888 = vpop.f32.mrb[0].mxu0
        %v889 = vadd.f32 0.0, %v888
        %v890 = vpop.f32.mrb[0].mxu0
        %891 = vmatprep.mubr.f32.mxu0 0.0
        %892 = vmatmul.mubr.f32.gmra.mrb[0].mxu0 %v807
        %v893 = vpop.f32.mrb[0].mxu0
        %v894 = vadd.f32 0.0, %v893
        %v895 = vpop.f32.mrb[0].mxu0
        %896 = vdwg.mxu0
        %v898 = vsel %vm479, %v785, 0
        %v901 = vsel %vm479, %v786, 0
        %v904 = vsel %vm479, %v787, 0
        %v907 = vsel %vm479, %v788, 0
        %v910 = vsel %vm492, %v462, 0
        %912 = vmatprep.subr.mxu0 0.0
        %913 = vmatpush1.msra.mxu0 %v910
        %914 = vmatprep.subr.mxu0 0.0
        %915 = vmatpush1.msra.mxu0 0.0
        %916 = vmatprep.subr.mxu0 0.0
        %917 = vmatpush1.msra.mxu0 0.0
        %918 = vmatprep.subr.mxu0 0.0
        %919 = vmatpush1.msra.mxu0 0.0
        %920 = vmatprep.subr.mxu0 0.0
        %921 = vmatpush1.msra.mxu0 0.0
        %922 = vmatprep.subr.mxu0 0.0
        %923 = vmatpush1.msra.mxu0 0.0
        %924 = vmatprep.subr.mxu0 0.0
        %925 = vmatpush1.msra.mxu0 0.0
        %926 = vmatprep.subr.mxu0 0.0
        %927 = vmatpush1.msra.mxu0 0.0
        %928 = vmatprep.subr.mxu0 0.0
        %929 = vmatpush1.msra.mxu0 0.0
        %930 = vmatprep.subr.mxu0 0.0
        %931 = vmatpush1.msra.mxu0 0.0
        %932 = vmatprep.subr.mxu0 0.0
        %933 = vmatpush1.msra.mxu0 0.0
        %934 = vmatprep.subr.mxu0 0.0
        %935 = vmatpush1.msra.mxu0 0.0
        %936 = vmatprep.subr.mxu0 0.0
        %937 = vmatpush1.msra.mxu0 0.0
        %938 = vmatprep.subr.mxu0 0.0
        %939 = vmatpush1.msra.mxu0 0.0
        %940 = vmatprep.subr.mxu0 0.0
        %941 = vmatpush1.msra.mxu0 0.0
        %942 = vmatprep.subr.mxu0 0.0
        %943 = vmatpush1.msra.mxu0 0.0
        %944 = vmatprep.subr.mxu0 0.0
        %945 = vmatpush1.msra.mxu0 0.0
        %946 = vmatprep.subr.mxu0 0.0
        %947 = vmatpush1.msra.mxu0 0.0
        %948 = vmatprep.subr.mxu0 0.0
        %949 = vmatpush1.msra.mxu0 0.0
        %950 = vmatprep.subr.mxu0 0.0
        %951 = vmatpush1.msra.mxu0 0.0
        %952 = vmatprep.subr.mxu0 0.0
        %953 = vmatpush1.msra.mxu0 0.0
        %954 = vmatprep.subr.mxu0 0.0
        %955 = vmatpush1.msra.mxu0 0.0
        %956 = vmatprep.subr.mxu0 0.0
        %957 = vmatpush1.msra.mxu0 0.0
        %958 = vmatprep.subr.mxu0 0.0
        %959 = vmatpush1.msra.mxu0 0.0
        %960 = vmatprep.subr.mxu0 0.0
        %961 = vmatpush1.msra.mxu0 0.0
        %962 = vmatprep.subr.mxu0 0.0
        %963 = vmatpush1.msra.mxu0 0.0
        %964 = vmatprep.subr.mxu0 0.0
        %965 = vmatpush1.msra.mxu0 0.0
        %966 = vmatprep.subr.mxu0 0.0
        %967 = vmatpush1.msra.mxu0 0.0
        %968 = vmatprep.subr.mxu0 0.0
        %969 = vmatpush1.msra.mxu0 0.0
        %970 = vmatprep.subr.mxu0 0.0
        %971 = vmatpush1.msra.mxu0 0.0
        %972 = vmatprep.subr.mxu0 0.0
        %973 = vmatpush1.msra.mxu0 0.0
        %974 = vmatprep.subr.mxu0 0.0
        %975 = vmatpush1.msra.mxu0 0.0
        %976 = vmatprep.mubr.f32.mxu0 0.0
        %977 = vmatmul.mubr.f32.gmra.mrb[0].mxu0 %v898
        %v978 = vpop.f32.mrb[0].mxu0
        %v979 = vadd.f32 %v879, %v978
        %v980 = vpop.f32.mrb[0].mxu0
        %981 = vmatprep.mubr.f32.mxu0 0.0
        %982 = vmatmul.mubr.f32.gmra.mrb[0].mxu0 %v901
        %v983 = vpop.f32.mrb[0].mxu0
        %v984 = vadd.f32 %v884, %v983
        %v985 = vpop.f32.mrb[0].mxu0
        %986 = vmatprep.mubr.f32.mxu0 0.0
        %987 = vmatmul.mubr.f32.gmra.mrb[0].mxu0 %v904
        %v988 = vpop.f32.mrb[0].mxu0
        %v989 = vadd.f32 %v889, %v988
        %v990 = vpop.f32.mrb[0].mxu0
        %991 = vmatprep.mubr.f32.mxu0 0.0
        %992 = vmatmul.mubr.f32.gmra.mrb[0].mxu0 %v907
        %v993 = vpop.f32.mrb[0].mxu0
        %v994 = vadd.f32 %v894, %v993
        %v995 = vpop.f32.mrb[0].mxu0
        %996 = vdwg.mxu0
        %v998 = vsel %vm479, %v793, 0
        %v1001 = vsel %vm479, %v794, 0
        %v1004 = vsel %vm479, %v795, 0
        %v1007 = vsel %vm479, %v796, 0
        %v1010 = vsel %vm492, %v466, 0
        %1012 = vmatprep.subr.mxu0 0.0
        %1013 = vmatpush1.msra.mxu0 %v1010
        %1014 = vmatprep.subr.mxu0 0.0
        %1015 = vmatpush1.msra.mxu0 0.0
        %1016 = vmatprep.subr.mxu0 0.0
        %1017 = vmatpush1.msra.mxu0 0.0
        %1018 = vmatprep.subr.mxu0 0.0
        %1019 = vmatpush1.msra.mxu0 0.0
        %1020 = vmatprep.subr.mxu0 0.0
        %1021 = vmatpush1.msra.mxu0 0.0
        %1022 = vmatprep.subr.mxu0 0.0
        %1023 = vmatpush1.msra.mxu0 0.0
        %1024 = vmatprep.subr.mxu0 0.0
        %1025 = vmatpush1.msra.mxu0 0.0
        %1026 = vmatprep.subr.mxu0 0.0
        %1027 = vmatpush1.msra.mxu0 0.0
        %1028 = vmatprep.subr.mxu0 0.0
        %1029 = vmatpush1.msra.mxu0 0.0
        %1030 = vmatprep.subr.mxu0 0.0
        %1031 = vmatpush1.msra.mxu0 0.0
        %1032 = vmatprep.subr.mxu0 0.0
        %1033 = vmatpush1.msra.mxu0 0.0
        %1034 = vmatprep.subr.mxu0 0.0
        %1035 = vmatpush1.msra.mxu0 0.0
        %1036 = vmatprep.subr.mxu0 0.0
        %1037 = vmatpush1.msra.mxu0 0.0
        %1038 = vmatprep.subr.mxu0 0.0
        %1039 = vmatpush1.msra.mxu0 0.0
        %1040 = vmatprep.subr.mxu0 0.0
        %1041 = vmatpush1.msra.mxu0 0.0
        %1042 = vmatprep.subr.mxu0 0.0
        %1043 = vmatpush1.msra.mxu0 0.0
        %1044 = vmatprep.subr.mxu0 0.0
        %1045 = vmatpush1.msra.mxu0 0.0
        %1046 = vmatprep.subr.mxu0 0.0
        %1047 = vmatpush1.msra.mxu0 0.0
        %1048 = vmatprep.subr.mxu0 0.0
        %1049 = vmatpush1.msra.mxu0 0.0
        %1050 = vmatprep.subr.mxu0 0.0
        %1051 = vmatpush1.msra.mxu0 0.0
        %1052 = vmatprep.subr.mxu0 0.0
        %1053 = vmatpush1.msra.mxu0 0.0
        %1054 = vmatprep.subr.mxu0 0.0
        %1055 = vmatpush1.msra.mxu0 0.0
        %1056 = vmatprep.subr.mxu0 0.0
        %1057 = vmatpush1.msra.mxu0 0.0
        %1058 = vmatprep.subr.mxu0 0.0
        %1059 = vmatpush1.msra.mxu0 0.0
        %1060 = vmatprep.subr.mxu0 0.0
        %1061 = vmatpush1.msra.mxu0 0.0
        %1062 = vmatprep.subr.mxu0 0.0
        %1063 = vmatpush1.msra.mxu0 0.0
        %1064 = vmatprep.subr.mxu0 0.0
        %1065 = vmatpush1.msra.mxu0 0.0
        %1066 = vmatprep.subr.mxu0 0.0
        %1067 = vmatpush1.msra.mxu0 0.0
        %1068 = vmatprep.subr.mxu0 0.0
        %1069 = vmatpush1.msra.mxu0 0.0
        %1070 = vmatprep.subr.mxu0 0.0
        %1071 = vmatpush1.msra.mxu0 0.0
        %1072 = vmatprep.subr.mxu0 0.0
        %1073 = vmatpush1.msra.mxu0 0.0
        %1074 = vmatprep.subr.mxu0 0.0
        %1075 = vmatpush1.msra.mxu0 0.0
        %1076 = vmatprep.mubr.f32.mxu0 0.0
        %1077 = vmatmul.mubr.f32.gmra.mrb[0].mxu0 %v998
        %v1078 = vpop.f32.mrb[0].mxu0
        %v1079 = vadd.f32 0.0, %v1078
        %v1080 = vpop.f32.mrb[0].mxu0
        %1081 = vmatprep.mubr.f32.mxu0 0.0
        %1082 = vmatmul.mubr.f32.gmra.mrb[0].mxu0 %v1001
        %v1083 = vpop.f32.mrb[0].mxu0
        %v1084 = vadd.f32 0.0, %v1083
        %v1085 = vpop.f32.mrb[0].mxu0
        %1086 = vmatprep.mubr.f32.mxu0 0.0
        %1087 = vmatmul.mubr.f32.gmra.mrb[0].mxu0 %v1004
        %v1088 = vpop.f32.mrb[0].mxu0
        %v1089 = vadd.f32 0.0, %v1088
        %v1090 = vpop.f32.mrb[0].mxu0
        %1091 = vmatprep.mubr.f32.mxu0 0.0
        %1092 = vmatmul.mubr.f32.gmra.mrb[0].mxu0 %v1007
        %v1093 = vpop.f32.mrb[0].mxu0
        %v1094 = vadd.f32 0.0, %v1093
        %v1095 = vpop.f32.mrb[0].mxu0
        %1096 = vdwg.mxu0
        %v1097 = vadd.f32 %v979, %v1079
        %v1098 = vadd.f32 %v984, %v1084
        %v1099 = vadd.f32 %v989, %v1089
        %v1100 = vadd.f32 %v994, %v1094
        %v1101 = vadd.f32 %v781, %v1097
        %v1102 = vadd.f32 %v782, %v1098
        %v1103 = vadd.f32 %v783, %v1099
        %v1104 = vadd.f32 %v784, %v1100
        %v1105 = vld [vmem:[%s3] sm:$0xff]
        %v1106 = vld [vmem:[%s3 + $0x8] sm:$0xff]
        %v1107 = vld [vmem:[%s3 + $0x10] sm:$0xff]
        %v1108 = vld [vmem:[%s3 + $0x18] sm:$0xff]
        %v1109 = vld [vmem:[%s3 + $0x20] sm:$0xff]
        %v1110 = vld [vmem:[%s3 + $0x28] sm:$0xff]
        %v1111 = vld [vmem:[%s3 + $0x30] sm:$0xff]
        %v1112 = vld [vmem:[%s3 + $0x38] sm:$0xff]
        %v1113 = vld [vmem:[%s3 + $0x40] sm:$0xff]
        %v1114 = vld [vmem:[%s3 + $0x48] sm:$0xff]
        %v1115 = vld [vmem:[%s3 + $0x50] sm:$0xff]
        %v1116 = vld [vmem:[%s3 + $0x58] sm:$0xff]
        %v1118 = vsel %vm479, %v1109, 0
        %v1121 = vsel %vm479, %v1110, 0
        %v1124 = vsel %vm479, %v1111, 0
        %v1127 = vsel %vm479, %v1112, 0
        %1129 = vmatprep.subr.mxu0 0.0
        %1130 = vmatpush1.msra.mxu0 %v494
        %1131 = vmatprep.subr.mxu0 0.0
        %1132 = vmatpush1.msra.mxu0 0.0
        %1133 = vmatprep.subr.mxu0 0.0
        %1134 = vmatpush1.msra.mxu0 0.0
        %1135 = vmatprep.subr.mxu0 0.0
        %1136 = vmatpush1.msra.mxu0 0.0
        %1137 = vmatprep.subr.mxu0 0.0
        %1138 = vmatpush1.msra.mxu0 0.0
        %1139 = vmatprep.subr.mxu0 0.0
        %1140 = vmatpush1.msra.mxu0 0.0
        %1141 = vmatprep.subr.mxu0 0.0
        %1142 = vmatpush1.msra.mxu0 0.0
        %1143 = vmatprep.subr.mxu0 0.0
        %1144 = vmatpush1.msra.mxu0 0.0
        %1145 = vmatprep.subr.mxu0 0.0
        %1146 = vmatpush1.msra.mxu0 0.0
        %1147 = vmatprep.subr.mxu0 0.0
        %1148 = vmatpush1.msra.mxu0 0.0
        %1149 = vmatprep.subr.mxu0 0.0
        %1150 = vmatpush1.msra.mxu0 0.0
        %1151 = vmatprep.subr.mxu0 0.0
        %1152 = vmatpush1.msra.mxu0 0.0
        %1153 = vmatprep.subr.mxu0 0.0
        %1154 = vmatpush1.msra.mxu0 0.0
        %1155 = vmatprep.subr.mxu0 0.0
        %1156 = vmatpush1.msra.mxu0 0.0
        %1157 = vmatprep.subr.mxu0 0.0
        %1158 = vmatpush1.msra.mxu0 0.0
        %1159 = vmatprep.subr.mxu0 0.0
        %1160 = vmatpush1.msra.mxu0 0.0
        %1161 = vmatprep.subr.mxu0 0.0
        %1162 = vmatpush1.msra.mxu0 0.0
        %1163 = vmatprep.subr.mxu0 0.0
        %1164 = vmatpush1.msra.mxu0 0.0
        %1165 = vmatprep.subr.mxu0 0.0
        %1166 = vmatpush1.msra.mxu0 0.0
        %1167 = vmatprep.subr.mxu0 0.0
        %1168 = vmatpush1.msra.mxu0 0.0
        %1169 = vmatprep.subr.mxu0 0.0
        %1170 = vmatpush1.msra.mxu0 0.0
        %1171 = vmatprep.subr.mxu0 0.0
        %1172 = vmatpush1.msra.mxu0 0.0
        %1173 = vmatprep.subr.mxu0 0.0
        %1174 = vmatpush1.msra.mxu0 0.0
        %1175 = vmatprep.subr.mxu0 0.0
        %1176 = vmatpush1.msra.mxu0 0.0
        %1177 = vmatprep.subr.mxu0 0.0
        %1178 = vmatpush1.msra.mxu0 0.0
        %1179 = vmatprep.subr.mxu0 0.0
        %1180 = vmatpush1.msra.mxu0 0.0
        %1181 = vmatprep.subr.mxu0 0.0
        %1182 = vmatpush1.msra.mxu0 0.0
        %1183 = vmatprep.subr.mxu0 0.0
        %1184 = vmatpush1.msra.mxu0 0.0
        %1185 = vmatprep.subr.mxu0 0.0
        %1186 = vmatpush1.msra.mxu0 0.0
        %1187 = vmatprep.subr.mxu0 0.0
        %1188 = vmatpush1.msra.mxu0 0.0
        %1189 = vmatprep.subr.mxu0 0.0
        %1190 = vmatpush1.msra.mxu0 0.0
        %1191 = vmatprep.subr.mxu0 0.0
        %1192 = vmatpush1.msra.mxu0 0.0
        %1193 = vmatprep.mubr.f32.mxu0 0.0
        %1194 = vmatmul.mubr.f32.gmra.mrb[0].mxu0 %v1118
        %v1195 = vpop.f32.mrb[0].mxu0
        %v1196 = vadd.f32 0.0, %v1195
        %v1197 = vpop.f32.mrb[0].mxu0
        %1198 = vmatprep.mubr.f32.mxu0 0.0
        %1199 = vmatmul.mubr.f32.gmra.mrb[0].mxu0 %v1121
        %v1200 = vpop.f32.mrb[0].mxu0
        %v1201 = vadd.f32 0.0, %v1200
        %v1202 = vpop.f32.mrb[0].mxu0
        %1203 = vmatprep.mubr.f32.mxu0 0.0
        %1204 = vmatmul.mubr.f32.gmra.mrb[0].mxu0 %v1124
        %v1205 = vpop.f32.mrb[0].mxu0
        %v1206 = vadd.f32 0.0, %v1205
        %v1207 = vpop.f32.mrb[0].mxu0
        %1208 = vmatprep.mubr.f32.mxu0 0.0
        %1209 = vmatmul.mubr.f32.gmra.mrb[0].mxu0 %v1127
        %v1210 = vpop.f32.mrb[0].mxu0
        %v1211 = vadd.f32 0.0, %v1210
        %v1212 = vpop.f32.mrb[0].mxu0
        %1213 = vdwg.mxu0
        %v1215 = vsel %vm479, %v1105, 0
        %v1218 = vsel %vm479, %v1106, 0
        %v1221 = vsel %vm479, %v1107, 0
        %v1224 = vsel %vm479, %v1108, 0
        %1226 = vmatprep.subr.mxu0 0.0
        %1227 = vmatpush1.msra.mxu0 %v594
        %1228 = vmatprep.subr.mxu0 0.0
        %1229 = vmatpush1.msra.mxu0 0.0
        %1230 = vmatprep.subr.mxu0 0.0
        %1231 = vmatpush1.msra.mxu0 0.0
        %1232 = vmatprep.subr.mxu0 0.0
        %1233 = vmatpush1.msra.mxu0 0.0
        %1234 = vmatprep.subr.mxu0 0.0
        %1235 = vmatpush1.msra.mxu0 0.0
        %1236 = vmatprep.subr.mxu0 0.0
        %1237 = vmatpush1.msra.mxu0 0.0
        %1238 = vmatprep.subr.mxu0 0.0
        %1239 = vmatpush1.msra.mxu0 0.0
        %1240 = vmatprep.subr.mxu0 0.0
        %1241 = vmatpush1.msra.mxu0 0.0
        %1242 = vmatprep.subr.mxu0 0.0
        %1243 = vmatpush1.msra.mxu0 0.0
        %1244 = vmatprep.subr.mxu0 0.0
        %1245 = vmatpush1.msra.mxu0 0.0
        %1246 = vmatprep.subr.mxu0 0.0
        %1247 = vmatpush1.msra.mxu0 0.0
        %1248 = vmatprep.subr.mxu0 0.0
        %1249 = vmatpush1.msra.mxu0 0.0
        %1250 = vmatprep.subr.mxu0 0.0
        %1251 = vmatpush1.msra.mxu0 0.0
        %1252 = vmatprep.subr.mxu0 0.0
        %1253 = vmatpush1.msra.mxu0 0.0
        %1254 = vmatprep.subr.mxu0 0.0
        %1255 = vmatpush1.msra.mxu0 0.0
        %1256 = vmatprep.subr.mxu0 0.0
        %1257 = vmatpush1.msra.mxu0 0.0
        %1258 = vmatprep.subr.mxu0 0.0
        %1259 = vmatpush1.msra.mxu0 0.0
        %1260 = vmatprep.subr.mxu0 0.0
        %1261 = vmatpush1.msra.mxu0 0.0
        %1262 = vmatprep.subr.mxu0 0.0
        %1263 = vmatpush1.msra.mxu0 0.0
        %1264 = vmatprep.subr.mxu0 0.0
        %1265 = vmatpush1.msra.mxu0 0.0
        %1266 = vmatprep.subr.mxu0 0.0
        %1267 = vmatpush1.msra.mxu0 0.0
        %1268 = vmatprep.subr.mxu0 0.0
        %1269 = vmatpush1.msra.mxu0 0.0
        %1270 = vmatprep.subr.mxu0 0.0
        %1271 = vmatpush1.msra.mxu0 0.0
        %1272 = vmatprep.subr.mxu0 0.0
        %1273 = vmatpush1.msra.mxu0 0.0
        %1274 = vmatprep.subr.mxu0 0.0
        %1275 = vmatpush1.msra.mxu0 0.0
        %1276 = vmatprep.subr.mxu0 0.0
        %1277 = vmatpush1.msra.mxu0 0.0
        %1278 = vmatprep.subr.mxu0 0.0
        %1279 = vmatpush1.msra.mxu0 0.0
        %1280 = vmatprep.subr.mxu0 0.0
        %1281 = vmatpush1.msra.mxu0 0.0
        %1282 = vmatprep.subr.mxu0 0.0
        %1283 = vmatpush1.msra.mxu0 0.0
        %1284 = vmatprep.subr.mxu0 0.0
        %1285 = vmatpush1.msra.mxu0 0.0
        %1286 = vmatprep.subr.mxu0 0.0
        %1287 = vmatpush1.msra.mxu0 0.0
        %1288 = vmatprep.subr.mxu0 0.0
        %1289 = vmatpush1.msra.mxu0 0.0
        %1290 = vmatprep.mubr.f32.mxu0 0.0
        %1291 = vmatmul.mubr.f32.gmra.mrb[0].mxu0 %v1215
        %v1292 = vpop.f32.mrb[0].mxu0
        %v1293 = vadd.f32 %v1196, %v1292
        %v1294 = vpop.f32.mrb[0].mxu0
        %1295 = vmatprep.mubr.f32.mxu0 0.0
        %1296 = vmatmul.mubr.f32.gmra.mrb[0].mxu0 %v1218
        %v1297 = vpop.f32.mrb[0].mxu0
        %v1298 = vadd.f32 %v1201, %v1297
        %v1299 = vpop.f32.mrb[0].mxu0
        %1300 = vmatprep.mubr.f32.mxu0 0.0
        %1301 = vmatmul.mubr.f32.gmra.mrb[0].mxu0 %v1221
        %v1302 = vpop.f32.mrb[0].mxu0
        %v1303 = vadd.f32 %v1206, %v1302
        %v1304 = vpop.f32.mrb[0].mxu0
        %1305 = vmatprep.mubr.f32.mxu0 0.0
        %1306 = vmatmul.mubr.f32.gmra.mrb[0].mxu0 %v1224
        %v1307 = vpop.f32.mrb[0].mxu0
        %v1308 = vadd.f32 %v1211, %v1307
        %v1309 = vpop.f32.mrb[0].mxu0
        %1310 = vdwg.mxu0
        %v1312 = vsel %vm479, %v1113, 0
        %v1315 = vsel %vm479, %v1114, 0
        %v1318 = vsel %vm479, %v1115, 0
        %v1321 = vsel %vm479, %v1116, 0
        %1323 = vmatprep.subr.mxu0 0.0
        %1324 = vmatpush1.msra.mxu0 %v694
        %1325 = vmatprep.subr.mxu0 0.0
        %1326 = vmatpush1.msra.mxu0 0.0
        %1327 = vmatprep.subr.mxu0 0.0
        %1328 = vmatpush1.msra.mxu0 0.0
        %1329 = vmatprep.subr.mxu0 0.0
        %1330 = vmatpush1.msra.mxu0 0.0
        %1331 = vmatprep.subr.mxu0 0.0
        %1332 = vmatpush1.msra.mxu0 0.0
        %1333 = vmatprep.subr.mxu0 0.0
        %1334 = vmatpush1.msra.mxu0 0.0
        %1335 = vmatprep.subr.mxu0 0.0
        %1336 = vmatpush1.msra.mxu0 0.0
        %1337 = vmatprep.subr.mxu0 0.0
        %1338 = vmatpush1.msra.mxu0 0.0
        %1339 = vmatprep.subr.mxu0 0.0
        %1340 = vmatpush1.msra.mxu0 0.0
        %1341 = vmatprep.subr.mxu0 0.0
        %1342 = vmatpush1.msra.mxu0 0.0
        %1343 = vmatprep.subr.mxu0 0.0
        %1344 = vmatpush1.msra.mxu0 0.0
        %1345 = vmatprep.subr.mxu0 0.0
        %1346 = vmatpush1.msra.mxu0 0.0
        %1347 = vmatprep.subr.mxu0 0.0
        %1348 = vmatpush1.msra.mxu0 0.0
        %1349 = vmatprep.subr.mxu0 0.0
        %1350 = vmatpush1.msra.mxu0 0.0
        %1351 = vmatprep.subr.mxu0 0.0
        %1352 = vmatpush1.msra.mxu0 0.0
        %1353 = vmatprep.subr.mxu0 0.0
        %1354 = vmatpush1.msra.mxu0 0.0
        %1355 = vmatprep.subr.mxu0 0.0
        %1356 = vmatpush1.msra.mxu0 0.0
        %1357 = vmatprep.subr.mxu0 0.0
        %1358 = vmatpush1.msra.mxu0 0.0
        %1359 = vmatprep.subr.mxu0 0.0
        %1360 = vmatpush1.msra.mxu0 0.0
        %1361 = vmatprep.subr.mxu0 0.0
        %1362 = vmatpush1.msra.mxu0 0.0
        %1363 = vmatprep.subr.mxu0 0.0
        %1364 = vmatpush1.msra.mxu0 0.0
        %1365 = vmatprep.subr.mxu0 0.0
        %1366 = vmatpush1.msra.mxu0 0.0
        %1367 = vmatprep.subr.mxu0 0.0
        %1368 = vmatpush1.msra.mxu0 0.0
        %1369 = vmatprep.subr.mxu0 0.0
        %1370 = vmatpush1.msra.mxu0 0.0
        %1371 = vmatprep.subr.mxu0 0.0
        %1372 = vmatpush1.msra.mxu0 0.0
        %1373 = vmatprep.subr.mxu0 0.0
        %1374 = vmatpush1.msra.mxu0 0.0
        %1375 = vmatprep.subr.mxu0 0.0
        %1376 = vmatpush1.msra.mxu0 0.0
        %1377 = vmatprep.subr.mxu0 0.0
        %1378 = vmatpush1.msra.mxu0 0.0
        %1379 = vmatprep.subr.mxu0 0.0
        %1380 = vmatpush1.msra.mxu0 0.0
        %1381 = vmatprep.subr.mxu0 0.0
        %1382 = vmatpush1.msra.mxu0 0.0
        %1383 = vmatprep.subr.mxu0 0.0
        %1384 = vmatpush1.msra.mxu0 0.0
        %1385 = vmatprep.subr.mxu0 0.0
        %1386 = vmatpush1.msra.mxu0 0.0
        %1387 = vmatprep.mubr.f32.mxu0 0.0
        %1388 = vmatmul.mubr.f32.gmra.mrb[0].mxu0 %v1312
        %v1389 = vpop.f32.mrb[0].mxu0
        %v1390 = vadd.f32 0.0, %v1389
        %v1391 = vpop.f32.mrb[0].mxu0
        %1392 = vmatprep.mubr.f32.mxu0 0.0
        %1393 = vmatmul.mubr.f32.gmra.mrb[0].mxu0 %v1315
        %v1394 = vpop.f32.mrb[0].mxu0
        %v1395 = vadd.f32 0.0, %v1394
        %v1396 = vpop.f32.mrb[0].mxu0
        %1397 = vmatprep.mubr.f32.mxu0 0.0
        %1398 = vmatmul.mubr.f32.gmra.mrb[0].mxu0 %v1318
        %v1399 = vpop.f32.mrb[0].mxu0
        %v1400 = vadd.f32 0.0, %v1399
        %v1401 = vpop.f32.mrb[0].mxu0
        %1402 = vmatprep.mubr.f32.mxu0 0.0
        %1403 = vmatmul.mubr.f32.gmra.mrb[0].mxu0 %v1321
        %v1404 = vpop.f32.mrb[0].mxu0
        %v1405 = vadd.f32 0.0, %v1404
        %v1406 = vpop.f32.mrb[0].mxu0
        %1407 = vdwg.mxu0
        %v1408 = vadd.f32 %v1293, %v1390
        %v1409 = vadd.f32 %v1298, %v1395
        %v1410 = vadd.f32 %v1303, %v1400
        %v1411 = vadd.f32 %v1308, %v1405
        %v1412 = vld [vmem:[%s5] sm:$0xff]
        %v1413 = vld [vmem:[%s5 + $0x8] sm:$0xff]
        %v1414 = vld [vmem:[%s5 + $0x10] sm:$0xff]
        %v1415 = vld [vmem:[%s5 + $0x18] sm:$0xff]
        %v1416 = vld [vmem:[%s5 + $0x20] sm:$0xff]
        %v1417 = vld [vmem:[%s5 + $0x28] sm:$0xff]
        %v1418 = vld [vmem:[%s5 + $0x30] sm:$0xff]
        %v1419 = vld [vmem:[%s5 + $0x38] sm:$0xff]
        %v1420 = vld [vmem:[%s5 + $0x40] sm:$0xff]
        %v1421 = vld [vmem:[%s5 + $0x48] sm:$0xff]
        %v1422 = vld [vmem:[%s5 + $0x50] sm:$0xff]
        %v1423 = vld [vmem:[%s5 + $0x58] sm:$0xff]
        %v1425 = vsel %vm479, %v1416, 0
        %v1428 = vsel %vm479, %v1417, 0
        %v1431 = vsel %vm479, %v1418, 0
        %v1434 = vsel %vm479, %v1419, 0
        %1436 = vmatprep.subr.mxu0 0.0
        %1437 = vmatpush1.msra.mxu0 %v810
        %1438 = vmatprep.subr.mxu0 0.0
        %1439 = vmatpush1.msra.mxu0 0.0
        %1440 = vmatprep.subr.mxu0 0.0
        %1441 = vmatpush1.msra.mxu0 0.0
        %1442 = vmatprep.subr.mxu0 0.0
        %1443 = vmatpush1.msra.mxu0 0.0
        %1444 = vmatprep.subr.mxu0 0.0
        %1445 = vmatpush1.msra.mxu0 0.0
        %1446 = vmatprep.subr.mxu0 0.0
        %1447 = vmatpush1.msra.mxu0 0.0
        %1448 = vmatprep.subr.mxu0 0.0
        %1449 = vmatpush1.msra.mxu0 0.0
        %1450 = vmatprep.subr.mxu0 0.0
        %1451 = vmatpush1.msra.mxu0 0.0
        %1452 = vmatprep.subr.mxu0 0.0
        %1453 = vmatpush1.msra.mxu0 0.0
        %1454 = vmatprep.subr.mxu0 0.0
        %1455 = vmatpush1.msra.mxu0 0.0
        %1456 = vmatprep.subr.mxu0 0.0
        %1457 = vmatpush1.msra.mxu0 0.0
        %1458 = vmatprep.subr.mxu0 0.0
        %1459 = vmatpush1.msra.mxu0 0.0
        %1460 = vmatprep.subr.mxu0 0.0
        %1461 = vmatpush1.msra.mxu0 0.0
        %1462 = vmatprep.subr.mxu0 0.0
        %1463 = vmatpush1.msra.mxu0 0.0
        %1464 = vmatprep.subr.mxu0 0.0
        %1465 = vmatpush1.msra.mxu0 0.0
        %1466 = vmatprep.subr.mxu0 0.0
        %1467 = vmatpush1.msra.mxu0 0.0
        %1468 = vmatprep.subr.mxu0 0.0
        %1469 = vmatpush1.msra.mxu0 0.0
        %1470 = vmatprep.subr.mxu0 0.0
        %1471 = vmatpush1.msra.mxu0 0.0
        %1472 = vmatprep.subr.mxu0 0.0
        %1473 = vmatpush1.msra.mxu0 0.0
        %1474 = vmatprep.subr.mxu0 0.0
        %1475 = vmatpush1.msra.mxu0 0.0
        %1476 = vmatprep.subr.mxu0 0.0
        %1477 = vmatpush1.msra.mxu0 0.0
        %1478 = vmatprep.subr.mxu0 0.0
        %1479 = vmatpush1.msra.mxu0 0.0
        %1480 = vmatprep.subr.mxu0 0.0
        %1481 = vmatpush1.msra.mxu0 0.0
        %1482 = vmatprep.subr.mxu0 0.0
        %1483 = vmatpush1.msra.mxu0 0.0
        %1484 = vmatprep.subr.mxu0 0.0
        %1485 = vmatpush1.msra.mxu0 0.0
        %1486 = vmatprep.subr.mxu0 0.0
        %1487 = vmatpush1.msra.mxu0 0.0
        %1488 = vmatprep.subr.mxu0 0.0
        %1489 = vmatpush1.msra.mxu0 0.0
        %1490 = vmatprep.subr.mxu0 0.0
        %1491 = vmatpush1.msra.mxu0 0.0
        %1492 = vmatprep.subr.mxu0 0.0
        %1493 = vmatpush1.msra.mxu0 0.0
        %1494 = vmatprep.subr.mxu0 0.0
        %1495 = vmatpush1.msra.mxu0 0.0
        %1496 = vmatprep.subr.mxu0 0.0
        %1497 = vmatpush1.msra.mxu0 0.0
        %1498 = vmatprep.subr.mxu0 0.0
        %1499 = vmatpush1.msra.mxu0 0.0
        %1500 = vmatprep.mubr.f32.mxu0 0.0
        %1501 = vmatmul.mubr.f32.gmra.mrb[0].mxu0 %v1425
        %v1502 = vpop.f32.mrb[0].mxu0
        %v1503 = vadd.f32 0.0, %v1502
        %v1504 = vpop.f32.mrb[0].mxu0
        %1505 = vmatprep.mubr.f32.mxu0 0.0
        %1506 = vmatmul.mubr.f32.gmra.mrb[0].mxu0 %v1428
        %v1507 = vpop.f32.mrb[0].mxu0
        %v1508 = vadd.f32 0.0, %v1507
        %v1509 = vpop.f32.mrb[0].mxu0
        %1510 = vmatprep.mubr.f32.mxu0 0.0
        %1511 = vmatmul.mubr.f32.gmra.mrb[0].mxu0 %v1431
        %v1512 = vpop.f32.mrb[0].mxu0
        %v1513 = vadd.f32 0.0, %v1512
        %v1514 = vpop.f32.mrb[0].mxu0
        %1515 = vmatprep.mubr.f32.mxu0 0.0
        %1516 = vmatmul.mubr.f32.gmra.mrb[0].mxu0 %v1434
        %v1517 = vpop.f32.mrb[0].mxu0
        %v1518 = vadd.f32 0.0, %v1517
        %v1519 = vpop.f32.mrb[0].mxu0
        %1520 = vdwg.mxu0
        %v1522 = vsel %vm479, %v1412, 0
        %v1525 = vsel %vm479, %v1413, 0
        %v1528 = vsel %vm479, %v1414, 0
        %v1531 = vsel %vm479, %v1415, 0
        %1533 = vmatprep.subr.mxu0 0.0
        %1534 = vmatpush1.msra.mxu0 %v910
        %1535 = vmatprep.subr.mxu0 0.0
        %1536 = vmatpush1.msra.mxu0 0.0
        %1537 = vmatprep.subr.mxu0 0.0
        %1538 = vmatpush1.msra.mxu0 0.0
        %1539 = vmatprep.subr.mxu0 0.0
        %1540 = vmatpush1.msra.mxu0 0.0
        %1541 = vmatprep.subr.mxu0 0.0
        %1542 = vmatpush1.msra.mxu0 0.0
        %1543 = vmatprep.subr.mxu0 0.0
        %1544 = vmatpush1.msra.mxu0 0.0
        %1545 = vmatprep.subr.mxu0 0.0
        %1546 = vmatpush1.msra.mxu0 0.0
        %1547 = vmatprep.subr.mxu0 0.0
        %1548 = vmatpush1.msra.mxu0 0.0
        %1549 = vmatprep.subr.mxu0 0.0
        %1550 = vmatpush1.msra.mxu0 0.0
        %1551 = vmatprep.subr.mxu0 0.0
        %1552 = vmatpush1.msra.mxu0 0.0
        %1553 = vmatprep.subr.mxu0 0.0
        %1554 = vmatpush1.msra.mxu0 0.0
        %1555 = vmatprep.subr.mxu0 0.0
        %1556 = vmatpush1.msra.mxu0 0.0
        %1557 = vmatprep.subr.mxu0 0.0
        %1558 = vmatpush1.msra.mxu0 0.0
        %1559 = vmatprep.subr.mxu0 0.0
        %1560 = vmatpush1.msra.mxu0 0.0
        %1561 = vmatprep.subr.mxu0 0.0
        %1562 = vmatpush1.msra.mxu0 0.0
        %1563 = vmatprep.subr.mxu0 0.0
        %1564 = vmatpush1.msra.mxu0 0.0
        %1565 = vmatprep.subr.mxu0 0.0
        %1566 = vmatpush1.msra.mxu0 0.0
        %1567 = vmatprep.subr.mxu0 0.0
        %1568 = vmatpush1.msra.mxu0 0.0
        %1569 = vmatprep.subr.mxu0 0.0
        %1570 = vmatpush1.msra.mxu0 0.0
        %1571 = vmatprep.subr.mxu0 0.0
        %1572 = vmatpush1.msra.mxu0 0.0
        %1573 = vmatprep.subr.mxu0 0.0
        %1574 = vmatpush1.msra.mxu0 0.0
        %1575 = vmatprep.subr.mxu0 0.0
        %1576 = vmatpush1.msra.mxu0 0.0
        %1577 = vmatprep.subr.mxu0 0.0
        %1578 = vmatpush1.msra.mxu0 0.0
        %1579 = vmatprep.subr.mxu0 0.0
        %1580 = vmatpush1.msra.mxu0 0.0
        %1581 = vmatprep.subr.mxu0 0.0
        %1582 = vmatpush1.msra.mxu0 0.0
        %1583 = vmatprep.subr.mxu0 0.0
        %1584 = vmatpush1.msra.mxu0 0.0
        %1585 = vmatprep.subr.mxu0 0.0
        %1586 = vmatpush1.msra.mxu0 0.0
        %1587 = vmatprep.subr.mxu0 0.0
        %1588 = vmatpush1.msra.mxu0 0.0
        %1589 = vmatprep.subr.mxu0 0.0
        %1590 = vmatpush1.msra.mxu0 0.0
        %1591 = vmatprep.subr.mxu0 0.0
        %1592 = vmatpush1.msra.mxu0 0.0
        %1593 = vmatprep.subr.mxu0 0.0
        %1594 = vmatpush1.msra.mxu0 0.0
        %1595 = vmatprep.subr.mxu0 0.0
        %1596 = vmatpush1.msra.mxu0 0.0
        %1597 = vmatprep.mubr.f32.mxu0 0.0
        %1598 = vmatmul.mubr.f32.gmra.mrb[0].mxu0 %v1522
        %v1599 = vpop.f32.mrb[0].mxu0
        %v1600 = vadd.f32 %v1503, %v1599
        %v1601 = vpop.f32.mrb[0].mxu0
        %1602 = vmatprep.mubr.f32.mxu0 0.0
        %1603 = vmatmul.mubr.f32.gmra.mrb[0].mxu0 %v1525
        %v1604 = vpop.f32.mrb[0].mxu0
        %v1605 = vadd.f32 %v1508, %v1604
        %v1606 = vpop.f32.mrb[0].mxu0
        %1607 = vmatprep.mubr.f32.mxu0 0.0
        %1608 = vmatmul.mubr.f32.gmra.mrb[0].mxu0 %v1528
        %v1609 = vpop.f32.mrb[0].mxu0
        %v1610 = vadd.f32 %v1513, %v1609
        %v1611 = vpop.f32.mrb[0].mxu0
        %1612 = vmatprep.mubr.f32.mxu0 0.0
        %1613 = vmatmul.mubr.f32.gmra.mrb[0].mxu0 %v1531
        %v1614 = vpop.f32.mrb[0].mxu0
        %v1615 = vadd.f32 %v1518, %v1614
        %v1616 = vpop.f32.mrb[0].mxu0
        %1617 = vdwg.mxu0
        %v1619 = vsel %vm479, %v1420, 0
        %v1622 = vsel %vm479, %v1421, 0
        %v1625 = vsel %vm479, %v1422, 0
        %v1628 = vsel %vm479, %v1423, 0
        %1630 = vmatprep.subr.mxu0 0.0
        %1631 = vmatpush1.msra.mxu0 %v1010
        %1632 = vmatprep.subr.mxu0 0.0
        %1633 = vmatpush1.msra.mxu0 0.0
        %1634 = vmatprep.subr.mxu0 0.0
        %1635 = vmatpush1.msra.mxu0 0.0
        %1636 = vmatprep.subr.mxu0 0.0
        %1637 = vmatpush1.msra.mxu0 0.0
        %1638 = vmatprep.subr.mxu0 0.0
        %1639 = vmatpush1.msra.mxu0 0.0
        %1640 = vmatprep.subr.mxu0 0.0
        %1641 = vmatpush1.msra.mxu0 0.0
        %1642 = vmatprep.subr.mxu0 0.0
        %1643 = vmatpush1.msra.mxu0 0.0
        %1644 = vmatprep.subr.mxu0 0.0
        %1645 = vmatpush1.msra.mxu0 0.0
        %1646 = vmatprep.subr.mxu0 0.0
        %1647 = vmatpush1.msra.mxu0 0.0
        %1648 = vmatprep.subr.mxu0 0.0
        %1649 = vmatpush1.msra.mxu0 0.0
        %1650 = vmatprep.subr.mxu0 0.0
        %1651 = vmatpush1.msra.mxu0 0.0
        %1652 = vmatprep.subr.mxu0 0.0
        %1653 = vmatpush1.msra.mxu0 0.0
        %1654 = vmatprep.subr.mxu0 0.0
        %1655 = vmatpush1.msra.mxu0 0.0
        %1656 = vmatprep.subr.mxu0 0.0
        %1657 = vmatpush1.msra.mxu0 0.0
        %1658 = vmatprep.subr.mxu0 0.0
        %1659 = vmatpush1.msra.mxu0 0.0
        %1660 = vmatprep.subr.mxu0 0.0
        %1661 = vmatpush1.msra.mxu0 0.0
        %1662 = vmatprep.subr.mxu0 0.0
        %1663 = vmatpush1.msra.mxu0 0.0
        %1664 = vmatprep.subr.mxu0 0.0
        %1665 = vmatpush1.msra.mxu0 0.0
        %1666 = vmatprep.subr.mxu0 0.0
        %1667 = vmatpush1.msra.mxu0 0.0
        %1668 = vmatprep.subr.mxu0 0.0
        %1669 = vmatpush1.msra.mxu0 0.0
        %1670 = vmatprep.subr.mxu0 0.0
        %1671 = vmatpush1.msra.mxu0 0.0
        %1672 = vmatprep.subr.mxu0 0.0
        %1673 = vmatpush1.msra.mxu0 0.0
        %1674 = vmatprep.subr.mxu0 0.0
        %1675 = vmatpush1.msra.mxu0 0.0
        %1676 = vmatprep.subr.mxu0 0.0
        %1677 = vmatpush1.msra.mxu0 0.0
        %1678 = vmatprep.subr.mxu0 0.0
        %1679 = vmatpush1.msra.mxu0 0.0
        %1680 = vmatprep.subr.mxu0 0.0
        %1681 = vmatpush1.msra.mxu0 0.0
        %1682 = vmatprep.subr.mxu0 0.0
        %1683 = vmatpush1.msra.mxu0 0.0
        %1684 = vmatprep.subr.mxu0 0.0
        %1685 = vmatpush1.msra.mxu0 0.0
        %1686 = vmatprep.subr.mxu0 0.0
        %1687 = vmatpush1.msra.mxu0 0.0
        %1688 = vmatprep.subr.mxu0 0.0
        %1689 = vmatpush1.msra.mxu0 0.0
        %1690 = vmatprep.subr.mxu0 0.0
        %1691 = vmatpush1.msra.mxu0 0.0
        %1692 = vmatprep.subr.mxu0 0.0
        %1693 = vmatpush1.msra.mxu0 0.0
        %1694 = vmatprep.mubr.f32.mxu0 0.0
        %1695 = vmatmul.mubr.f32.gmra.mrb[0].mxu0 %v1619
        %v1696 = vpop.f32.mrb[0].mxu0
        %v1697 = vadd.f32 0.0, %v1696
        %v1698 = vpop.f32.mrb[0].mxu0
        %1699 = vmatprep.mubr.f32.mxu0 0.0
        %1700 = vmatmul.mubr.f32.gmra.mrb[0].mxu0 %v1622
        %v1701 = vpop.f32.mrb[0].mxu0
        %v1702 = vadd.f32 0.0, %v1701
        %v1703 = vpop.f32.mrb[0].mxu0
        %1704 = vmatprep.mubr.f32.mxu0 0.0
        %1705 = vmatmul.mubr.f32.gmra.mrb[0].mxu0 %v1625
        %v1706 = vpop.f32.mrb[0].mxu0
        %v1707 = vadd.f32 0.0, %v1706
        %v1708 = vpop.f32.mrb[0].mxu0
        %1709 = vmatprep.mubr.f32.mxu0 0.0
        %1710 = vmatmul.mubr.f32.gmra.mrb[0].mxu0 %v1628
        %v1711 = vpop.f32.mrb[0].mxu0
        %v1712 = vadd.f32 0.0, %v1711
        %v1713 = vpop.f32.mrb[0].mxu0
        %1714 = vdwg.mxu0
        %v1715 = vadd.f32 %v1600, %v1697
        %v1716 = vadd.f32 %v1605, %v1702
        %v1717 = vadd.f32 %v1610, %v1707
        %v1718 = vadd.f32 %v1615, %v1712
        %v1719 = vadd.f32 %v1408, %v1715
        %v1720 = vadd.f32 %v1409, %v1716
        %v1721 = vadd.f32 %v1410, %v1717
        %v1722 = vadd.f32 %v1411, %v1718
        %v1723 = vtanh.pop %v1101
        %v1724 = vtanh.pop %v1102
        %v1725 = vtanh.pop %v1103
        %v1726 = vtanh.pop %v1104
        %v1727 = vmul.f32 %v1719, 0.5
        %v1728 = vmul.f32 %v1720, 0.5
        %v1729 = vmul.f32 %v1721, 0.5
        %v1730 = vmul.f32 %v1722, 0.5
        %v1731 = vtanh.pop %v1727
        %v1732 = vtanh.pop %v1728
        %v1733 = vtanh.pop %v1729
        %v1734 = vtanh.pop %v1730
        %v1735 = vadd.f32 %v1731, 1.0
        %v1736 = vadd.f32 %v1732, 1.0
        %v1737 = vadd.f32 %v1733, 1.0
        %v1738 = vadd.f32 %v1734, 1.0
        %v1739 = vmul.f32 %v1735, 0.5
        %v1740 = vmul.f32 %v1736, 0.5
        %v1741 = vmul.f32 %v1737, 0.5
        %v1742 = vmul.f32 %v1738, 0.5
        %v1743 = vmul.f32 %v1723, %v1739
        %v1744 = vmul.f32 %v1724, %v1740
        %v1745 = vmul.f32 %v1725, %v1741
        %v1746 = vmul.f32 %v1726, %v1742
        %v1747 = vld [vmem:[%s6] sm:$0xff]
        %v1748 = vld [vmem:[%s6 + $0x8] sm:$0xff]
        %v1749 = vld [vmem:[%s6 + $0x10] sm:$0xff]
        %v1750 = vld [vmem:[%s6 + $0x18] sm:$0xff]
        %v1751 = vld [vmem:[%s8] sm:$0xff]
        %v1752 = vld [vmem:[%s8 + $0x8] sm:$0xff]
        %v1753 = vld [vmem:[%s8 + $0x10] sm:$0xff]
        %v1754 = vld [vmem:[%s8 + $0x18] sm:$0xff]
        %v1756 = vsel %vm479, %v1751, 0
        %v1759 = vsel %vm479, %v1752, 0
        %v1762 = vsel %vm479, %v1753, 0
        %v1765 = vsel %vm479, %v1754, 0
        %1767 = vmatprep.subr.mxu0 0.0
        %1768 = vmatpush1.msra.mxu0 %v810
        %1769 = vmatprep.subr.mxu0 0.0
        %1770 = vmatpush1.msra.mxu0 0.0
        %1771 = vmatprep.subr.mxu0 0.0
        %1772 = vmatpush1.msra.mxu0 0.0
        %1773 = vmatprep.subr.mxu0 0.0
        %1774 = vmatpush1.msra.mxu0 0.0
        %1775 = vmatprep.subr.mxu0 0.0
        %1776 = vmatpush1.msra.mxu0 0.0
        %1777 = vmatprep.subr.mxu0 0.0
        %1778 = vmatpush1.msra.mxu0 0.0
        %1779 = vmatprep.subr.mxu0 0.0
        %1780 = vmatpush1.msra.mxu0 0.0
        %1781 = vmatprep.subr.mxu0 0.0
        %1782 = vmatpush1.msra.mxu0 0.0
        %1783 = vmatprep.subr.mxu0 0.0
        %1784 = vmatpush1.msra.mxu0 0.0
        %1785 = vmatprep.subr.mxu0 0.0
        %1786 = vmatpush1.msra.mxu0 0.0
        %1787 = vmatprep.subr.mxu0 0.0
        %1788 = vmatpush1.msra.mxu0 0.0
        %1789 = vmatprep.subr.mxu0 0.0
        %1790 = vmatpush1.msra.mxu0 0.0
        %1791 = vmatprep.subr.mxu0 0.0
        %1792 = vmatpush1.msra.mxu0 0.0
        %1793 = vmatprep.subr.mxu0 0.0
        %1794 = vmatpush1.msra.mxu0 0.0
        %1795 = vmatprep.subr.mxu0 0.0
        %1796 = vmatpush1.msra.mxu0 0.0
        %1797 = vmatprep.subr.mxu0 0.0
        %1798 = vmatpush1.msra.mxu0 0.0
        %1799 = vmatprep.subr.mxu0 0.0
        %1800 = vmatpush1.msra.mxu0 0.0
        %1801 = vmatprep.subr.mxu0 0.0
        %1802 = vmatpush1.msra.mxu0 0.0
        %1803 = vmatprep.subr.mxu0 0.0
        %1804 = vmatpush1.msra.mxu0 0.0
        %1805 = vmatprep.subr.mxu0 0.0
        %1806 = vmatpush1.msra.mxu0 0.0
        %1807 = vmatprep.subr.mxu0 0.0
        %1808 = vmatpush1.msra.mxu0 0.0
        %1809 = vmatprep.subr.mxu0 0.0
        %1810 = vmatpush1.msra.mxu0 0.0
        %1811 = vmatprep.subr.mxu0 0.0
        %1812 = vmatpush1.msra.mxu0 0.0
        %1813 = vmatprep.subr.mxu0 0.0
        %1814 = vmatpush1.msra.mxu0 0.0
        %1815 = vmatprep.subr.mxu0 0.0
        %1816 = vmatpush1.msra.mxu0 0.0
        %1817 = vmatprep.subr.mxu0 0.0
        %1818 = vmatpush1.msra.mxu0 0.0
        %1819 = vmatprep.subr.mxu0 0.0
        %1820 = vmatpush1.msra.mxu0 0.0
        %1821 = vmatprep.subr.mxu0 0.0
        %1822 = vmatpush1.msra.mxu0 0.0
        %1823 = vmatprep.subr.mxu0 0.0
        %1824 = vmatpush1.msra.mxu0 0.0
        %1825 = vmatprep.subr.mxu0 0.0
        %1826 = vmatpush1.msra.mxu0 0.0
        %1827 = vmatprep.subr.mxu0 0.0
        %1828 = vmatpush1.msra.mxu0 0.0
        %1829 = vmatprep.subr.mxu0 0.0
        %1830 = vmatpush1.msra.mxu0 0.0
        %1831 = vmatprep.mubr.f32.mxu0 0.0
        %1832 = vmatmul.mubr.f32.gmra.mrb[0].mxu0 %v1756
        %v1833 = vpop.f32.mrb[0].mxu0
        %v1834 = vadd.f32 0.0, %v1833
        %v1835 = vpop.f32.mrb[0].mxu0
        %1836 = vmatprep.mubr.f32.mxu0 0.0
        %1837 = vmatmul.mubr.f32.gmra.mrb[0].mxu0 %v1759
        %v1838 = vpop.f32.mrb[0].mxu0
        %v1839 = vadd.f32 0.0, %v1838
        %v1840 = vpop.f32.mrb[0].mxu0
        %1841 = vmatprep.mubr.f32.mxu0 0.0
        %1842 = vmatmul.mubr.f32.gmra.mrb[0].mxu0 %v1762
        %v1843 = vpop.f32.mrb[0].mxu0
        %v1844 = vadd.f32 0.0, %v1843
        %v1845 = vpop.f32.mrb[0].mxu0
        %1846 = vmatprep.mubr.f32.mxu0 0.0
        %1847 = vmatmul.mubr.f32.gmra.mrb[0].mxu0 %v1765
        %v1848 = vpop.f32.mrb[0].mxu0
        %v1849 = vadd.f32 0.0, %v1848
        %v1850 = vpop.f32.mrb[0].mxu0
        %1851 = vdwg.mxu0
        %vm1852 = vcmask 261120
        %v1854 = vsel %vm1852, %v1747, 0
        %v1857 = vsel %vm1852, %v1748, 0
        %v1860 = vsel %vm1852, %v1749, 0
        %v1863 = vsel %vm1852, %v1750, 0
        %1865 = vmatprep.subr.mxu0 0.0
        %1866 = vmatpush1.msra.mxu0 %v1743
        %1867 = vmatprep.subr.mxu0 0.0
        %1868 = vmatpush1.msra.mxu0 %v1744
        %1869 = vmatprep.subr.mxu0 0.0
        %1870 = vmatpush1.msra.mxu0 %v1745
        %1871 = vmatprep.subr.mxu0 0.0
        %1872 = vmatpush1.msra.mxu0 %v1746
        %1873 = vmatprep.subr.mxu0 0.0
        %1874 = vmatpush1.msra.mxu0 0.0
        %1875 = vmatprep.subr.mxu0 0.0
        %1876 = vmatpush1.msra.mxu0 0.0
        %1877 = vmatprep.subr.mxu0 0.0
        %1878 = vmatpush1.msra.mxu0 0.0
        %1879 = vmatprep.subr.mxu0 0.0
        %1880 = vmatpush1.msra.mxu0 0.0
        %1881 = vmatprep.subr.mxu0 0.0
        %1882 = vmatpush1.msra.mxu0 0.0
        %1883 = vmatprep.subr.mxu0 0.0
        %1884 = vmatpush1.msra.mxu0 0.0
        %1885 = vmatprep.subr.mxu0 0.0
        %1886 = vmatpush1.msra.mxu0 0.0
        %1887 = vmatprep.subr.mxu0 0.0
        %1888 = vmatpush1.msra.mxu0 0.0
        %1889 = vmatprep.subr.mxu0 0.0
        %1890 = vmatpush1.msra.mxu0 0.0
        %1891 = vmatprep.subr.mxu0 0.0
        %1892 = vmatpush1.msra.mxu0 0.0
        %1893 = vmatprep.subr.mxu0 0.0
        %1894 = vmatpush1.msra.mxu0 0.0
        %1895 = vmatprep.subr.mxu0 0.0
        %1896 = vmatpush1.msra.mxu0 0.0
        %1897 = vmatprep.subr.mxu0 0.0
        %1898 = vmatpush1.msra.mxu0 0.0
        %1899 = vmatprep.subr.mxu0 0.0
        %1900 = vmatpush1.msra.mxu0 0.0
        %1901 = vmatprep.subr.mxu0 0.0
        %1902 = vmatpush1.msra.mxu0 0.0
        %1903 = vmatprep.subr.mxu0 0.0
        %1904 = vmatpush1.msra.mxu0 0.0
        %1905 = vmatprep.subr.mxu0 0.0
        %1906 = vmatpush1.msra.mxu0 0.0
        %1907 = vmatprep.subr.mxu0 0.0
        %1908 = vmatpush1.msra.mxu0 0.0
        %1909 = vmatprep.subr.mxu0 0.0
        %1910 = vmatpush1.msra.mxu0 0.0
        %1911 = vmatprep.subr.mxu0 0.0
        %1912 = vmatpush1.msra.mxu0 0.0
        %1913 = vmatprep.subr.mxu0 0.0
        %1914 = vmatpush1.msra.mxu0 0.0
        %1915 = vmatprep.subr.mxu0 0.0
        %1916 = vmatpush1.msra.mxu0 0.0
        %1917 = vmatprep.subr.mxu0 0.0
        %1918 = vmatpush1.msra.mxu0 0.0
        %1919 = vmatprep.subr.mxu0 0.0
        %1920 = vmatpush1.msra.mxu0 0.0
        %1921 = vmatprep.subr.mxu0 0.0
        %1922 = vmatpush1.msra.mxu0 0.0
        %1923 = vmatprep.subr.mxu0 0.0
        %1924 = vmatpush1.msra.mxu0 0.0
        %1925 = vmatprep.subr.mxu0 0.0
        %1926 = vmatpush1.msra.mxu0 0.0
        %1927 = vmatprep.subr.mxu0 0.0
        %1928 = vmatpush1.msra.mxu0 0.0
        %1929 = vmatprep.mubr.f32.mxu0 0.0
        %1930 = vmatmul.mubr.f32.gmra.mrb[0].mxu0 %v1854
        %v1931 = vpop.f32.mrb[0].mxu0
        %v1932 = vadd.f32 %v1834, %v1931
        %v1933 = vpop.f32.mrb[0].mxu0
        %1934 = vmatprep.mubr.f32.mxu0 0.0
        %1935 = vmatmul.mubr.f32.gmra.mrb[0].mxu0 %v1857
        %v1936 = vpop.f32.mrb[0].mxu0
        %v1937 = vadd.f32 %v1839, %v1936
        %v1938 = vpop.f32.mrb[0].mxu0
        %1939 = vmatprep.mubr.f32.mxu0 0.0
        %1940 = vmatmul.mubr.f32.gmra.mrb[0].mxu0 %v1860
        %v1941 = vpop.f32.mrb[0].mxu0
        %v1942 = vadd.f32 %v1844, %v1941
        %v1943 = vpop.f32.mrb[0].mxu0
        %1944 = vmatprep.mubr.f32.mxu0 0.0
        %1945 = vmatmul.mubr.f32.gmra.mrb[0].mxu0 %v1863
        %v1946 = vpop.f32.mrb[0].mxu0
        %v1947 = vadd.f32 %v1849, %v1946
        %v1948 = vpop.f32.mrb[0].mxu0
        %1949 = vdwg.mxu0
        %v1950 = vld [vmem:[%s7] sm:$0xff]
        %v1951 = vld [vmem:[%s7 + $0x8] sm:$0xff]
        %v1952 = vld [vmem:[%s7 + $0x10] sm:$0xff]
        %v1953 = vld [vmem:[%s7 + $0x18] sm:$0xff]
        %v1954 = vld [vmem:[%s9] sm:$0xff]
        %v1955 = vld [vmem:[%s9 + $0x8] sm:$0xff]
        %v1956 = vld [vmem:[%s9 + $0x10] sm:$0xff]
        %v1957 = vld [vmem:[%s9 + $0x18] sm:$0xff]
        %v1959 = vsel %vm479, %v1954, 0
        %v1962 = vsel %vm479, %v1955, 0
        %v1965 = vsel %vm479, %v1956, 0
        %v1968 = vsel %vm479, %v1957, 0
        %1970 = vmatprep.subr.mxu0 0.0
        %1971 = vmatpush1.msra.mxu0 %v810
        %1972 = vmatprep.subr.mxu0 0.0
        %1973 = vmatpush1.msra.mxu0 0.0
        %1974 = vmatprep.subr.mxu0 0.0
        %1975 = vmatpush1.msra.mxu0 0.0
        %1976 = vmatprep.subr.mxu0 0.0
        %1977 = vmatpush1.msra.mxu0 0.0
        %1978 = vmatprep.subr.mxu0 0.0
        %1979 = vmatpush1.msra.mxu0 0.0
        %1980 = vmatprep.subr.mxu0 0.0
        %1981 = vmatpush1.msra.mxu0 0.0
        %1982 = vmatprep.subr.mxu0 0.0
        %1983 = vmatpush1.msra.mxu0 0.0
        %1984 = vmatprep.subr.mxu0 0.0
        %1985 = vmatpush1.msra.mxu0 0.0
        %1986 = vmatprep.subr.mxu0 0.0
        %1987 = vmatpush1.msra.mxu0 0.0
        %1988 = vmatprep.subr.mxu0 0.0
        %1989 = vmatpush1.msra.mxu0 0.0
        %1990 = vmatprep.subr.mxu0 0.0
        %1991 = vmatpush1.msra.mxu0 0.0
        %1992 = vmatprep.subr.mxu0 0.0
        %1993 = vmatpush1.msra.mxu0 0.0
        %1994 = vmatprep.subr.mxu0 0.0
        %1995 = vmatpush1.msra.mxu0 0.0
        %1996 = vmatprep.subr.mxu0 0.0
        %1997 = vmatpush1.msra.mxu0 0.0
        %1998 = vmatprep.subr.mxu0 0.0
        %1999 = vmatpush1.msra.mxu0 0.0
        %2000 = vmatprep.subr.mxu0 0.0
        %2001 = vmatpush1.msra.mxu0 0.0
        %2002 = vmatprep.subr.mxu0 0.0
        %2003 = vmatpush1.msra.mxu0 0.0
        %2004 = vmatprep.subr.mxu0 0.0
        %2005 = vmatpush1.msra.mxu0 0.0
        %2006 = vmatprep.subr.mxu0 0.0
        %2007 = vmatpush1.msra.mxu0 0.0
        %2008 = vmatprep.subr.mxu0 0.0
        %2009 = vmatpush1.msra.mxu0 0.0
        %2010 = vmatprep.subr.mxu0 0.0
        %2011 = vmatpush1.msra.mxu0 0.0
        %2012 = vmatprep.subr.mxu0 0.0
        %2013 = vmatpush1.msra.mxu0 0.0
        %2014 = vmatprep.subr.mxu0 0.0
        %2015 = vmatpush1.msra.mxu0 0.0
        %2016 = vmatprep.subr.mxu0 0.0
        %2017 = vmatpush1.msra.mxu0 0.0
        %2018 = vmatprep.subr.mxu0 0.0
        %2019 = vmatpush1.msra.mxu0 0.0
        %2020 = vmatprep.subr.mxu0 0.0
        %2021 = vmatpush1.msra.mxu0 0.0
        %2022 = vmatprep.subr.mxu0 0.0
        %2023 = vmatpush1.msra.mxu0 0.0
        %2024 = vmatprep.subr.mxu0 0.0
        %2025 = vmatpush1.msra.mxu0 0.0
        %2026 = vmatprep.subr.mxu0 0.0
        %2027 = vmatpush1.msra.mxu0 0.0
        %2028 = vmatprep.subr.mxu0 0.0
        %2029 = vmatpush1.msra.mxu0 0.0
        %2030 = vmatprep.subr.mxu0 0.0
        %2031 = vmatpush1.msra.mxu0 0.0
        %2032 = vmatprep.subr.mxu0 0.0
        %2033 = vmatpush1.msra.mxu0 0.0
        %2034 = vmatprep.mubr.f32.mxu0 0.0
        %2035 = vmatmul.mubr.f32.gmra.mrb[0].mxu0 %v1959
        %v2036 = vpop.f32.mrb[0].mxu0
        %v2037 = vadd.f32 0.0, %v2036
        %v2038 = vpop.f32.mrb[0].mxu0
        %2039 = vmatprep.mubr.f32.mxu0 0.0
        %2040 = vmatmul.mubr.f32.gmra.mrb[0].mxu0 %v1962
        %v2041 = vpop.f32.mrb[0].mxu0
        %v2042 = vadd.f32 0.0, %v2041
        %v2043 = vpop.f32.mrb[0].mxu0
        %2044 = vmatprep.mubr.f32.mxu0 0.0
        %2045 = vmatmul.mubr.f32.gmra.mrb[0].mxu0 %v1965
        %v2046 = vpop.f32.mrb[0].mxu0
        %v2047 = vadd.f32 0.0, %v2046
        %v2048 = vpop.f32.mrb[0].mxu0
        %2049 = vmatprep.mubr.f32.mxu0 0.0
        %2050 = vmatmul.mubr.f32.gmra.mrb[0].mxu0 %v1968
        %v2051 = vpop.f32.mrb[0].mxu0
        %v2052 = vadd.f32 0.0, %v2051
        %v2053 = vpop.f32.mrb[0].mxu0
        %2054 = vdwg.mxu0
        %v2056 = vsel %vm1852, %v1950, 0
        %v2059 = vsel %vm1852, %v1951, 0
        %v2062 = vsel %vm1852, %v1952, 0
        %v2065 = vsel %vm1852, %v1953, 0
        %2067 = vmatprep.subr.mxu0 0.0
        %2068 = vmatpush1.msra.mxu0 %v1743
        %2069 = vmatprep.subr.mxu0 0.0
        %2070 = vmatpush1.msra.mxu0 %v1744
        %2071 = vmatprep.subr.mxu0 0.0
        %2072 = vmatpush1.msra.mxu0 %v1745
        %2073 = vmatprep.subr.mxu0 0.0
        %2074 = vmatpush1.msra.mxu0 %v1746
        %2075 = vmatprep.subr.mxu0 0.0
        %2076 = vmatpush1.msra.mxu0 0.0
        %2077 = vmatprep.subr.mxu0 0.0
        %2078 = vmatpush1.msra.mxu0 0.0
        %2079 = vmatprep.subr.mxu0 0.0
        %2080 = vmatpush1.msra.mxu0 0.0
        %2081 = vmatprep.subr.mxu0 0.0
        %2082 = vmatpush1.msra.mxu0 0.0
        %2083 = vmatprep.subr.mxu0 0.0
        %2084 = vmatpush1.msra.mxu0 0.0
        %2085 = vmatprep.subr.mxu0 0.0
        %2086 = vmatpush1.msra.mxu0 0.0
        %2087 = vmatprep.subr.mxu0 0.0
        %2088 = vmatpush1.msra.mxu0 0.0
        %2089 = vmatprep.subr.mxu0 0.0
        %2090 = vmatpush1.msra.mxu0 0.0
        %2091 = vmatprep.subr.mxu0 0.0
        %2092 = vmatpush1.msra.mxu0 0.0
        %2093 = vmatprep.subr.mxu0 0.0
        %2094 = vmatpush1.msra.mxu0 0.0
        %2095 = vmatprep.subr.mxu0 0.0
        %2096 = vmatpush1.msra.mxu0 0.0
        %2097 = vmatprep.subr.mxu0 0.0
        %2098 = vmatpush1.msra.mxu0 0.0
        %2099 = vmatprep.subr.mxu0 0.0
        %2100 = vmatpush1.msra.mxu0 0.0
        %2101 = vmatprep.subr.mxu0 0.0
        %2102 = vmatpush1.msra.mxu0 0.0
        %2103 = vmatprep.subr.mxu0 0.0
        %2104 = vmatpush1.msra.mxu0 0.0
        %2105 = vmatprep.subr.mxu0 0.0
        %2106 = vmatpush1.msra.mxu0 0.0
        %2107 = vmatprep.subr.mxu0 0.0
        %2108 = vmatpush1.msra.mxu0 0.0
        %2109 = vmatprep.subr.mxu0 0.0
        %2110 = vmatpush1.msra.mxu0 0.0
        %2111 = vmatprep.subr.mxu0 0.0
        %2112 = vmatpush1.msra.mxu0 0.0
        %2113 = vmatprep.subr.mxu0 0.0
        %2114 = vmatpush1.msra.mxu0 0.0
        %2115 = vmatprep.subr.mxu0 0.0
        %2116 = vmatpush1.msra.mxu0 0.0
        %2117 = vmatprep.subr.mxu0 0.0
        %2118 = vmatpush1.msra.mxu0 0.0
        %2119 = vmatprep.subr.mxu0 0.0
        %2120 = vmatpush1.msra.mxu0 0.0
        %2121 = vmatprep.subr.mxu0 0.0
        %2122 = vmatpush1.msra.mxu0 0.0
        %2123 = vmatprep.subr.mxu0 0.0
        %2124 = vmatpush1.msra.mxu0 0.0
        %2125 = vmatprep.subr.mxu0 0.0
        %2126 = vmatpush1.msra.mxu0 0.0
        %2127 = vmatprep.subr.mxu0 0.0
        %2128 = vmatpush1.msra.mxu0 0.0
        %2129 = vmatprep.subr.mxu0 0.0
        %2130 = vmatpush1.msra.mxu0 0.0
        %2131 = vmatprep.mubr.f32.mxu0 0.0
        %2132 = vmatmul.mubr.f32.gmra.mrb[0].mxu0 %v2056
        %v2133 = vpop.f32.mrb[0].mxu0
        %v2134 = vadd.f32 %v2037, %v2133
        %v2135 = vpop.f32.mrb[0].mxu0
        %2136 = vmatprep.mubr.f32.mxu0 0.0
        %2137 = vmatmul.mubr.f32.gmra.mrb[0].mxu0 %v2059
        %v2138 = vpop.f32.mrb[0].mxu0
        %v2139 = vadd.f32 %v2042, %v2138
        %v2140 = vpop.f32.mrb[0].mxu0
        %2141 = vmatprep.mubr.f32.mxu0 0.0
        %2142 = vmatmul.mubr.f32.gmra.mrb[0].mxu0 %v2062
        %v2143 = vpop.f32.mrb[0].mxu0
        %v2144 = vadd.f32 %v2047, %v2143
        %v2145 = vpop.f32.mrb[0].mxu0
        %2146 = vmatprep.mubr.f32.mxu0 0.0
        %2147 = vmatmul.mubr.f32.gmra.mrb[0].mxu0 %v2065
        %v2148 = vpop.f32.mrb[0].mxu0
        %v2149 = vadd.f32 %v2052, %v2148
        %v2150 = vpop.f32.mrb[0].mxu0
        %2151 = vdwg.mxu0
        %v2152 = vtanh.pop %v1932
        %v2153 = vtanh.pop %v1937
        %v2154 = vtanh.pop %v1942
        %v2155 = vtanh.pop %v1947
        %v2156 = vmul.f32 %v2134, 0.5
        %v2157 = vmul.f32 %v2139, 0.5
        %v2158 = vmul.f32 %v2144, 0.5
        %v2159 = vmul.f32 %v2149, 0.5
        %v2160 = vtanh.pop %v2156
        %v2161 = vtanh.pop %v2157
        %v2162 = vtanh.pop %v2158
        %v2163 = vtanh.pop %v2159
        %v2164 = vadd.f32 %v2160, 1.0
        %v2165 = vadd.f32 %v2161, 1.0
        %v2166 = vadd.f32 %v2162, 1.0
        %v2167 = vadd.f32 %v2163, 1.0
        %v2168 = vmul.f32 %v2164, 0.5
        %v2169 = vmul.f32 %v2165, 0.5
        %v2170 = vmul.f32 %v2166, 0.5
        %v2171 = vmul.f32 %v2167, 0.5
        %v2172 = vmul.f32 %v2152, %v2168
        %v2173 = vmul.f32 %v2153, %v2169
        %v2174 = vmul.f32 %v2154, %v2170
        %v2175 = vmul.f32 %v2155, %v2171
        %v2176 = vadd.f32 %v1743, %v2172
        %v2177 = vadd.f32 %v1744, %v2173
        %v2178 = vadd.f32 %v1745, %v2174
        %v2179 = vadd.f32 %v1746, %v2175
        %2180 = vrot.lane.b32.xlu0 %v2176, 16
        %v2181 = vpop.permute.xlu0 %2180
        %v2182 = vsel %vm432, %v2181, %v2176
        %2183 = vrot.lane.b32.xlu0 %v2177, 16
        %v2184 = vpop.permute.xlu0 %2183
        %v2185 = vsel %vm432, %v2184, %v2177
        %2186 = vrot.lane.b32.xlu0 %v2178, 16
        %v2187 = vpop.permute.xlu0 %2186
        %v2188 = vsel %vm432, %v2187, %v2178
        %2189 = vrot.lane.b32.xlu0 %v2179, 16
        %v2190 = vpop.permute.xlu0 %2189
        %v2191 = vsel %vm432, %v2190, %v2179
        %2192 = vrot.lane.b32.xlu0 %v2182, 16
        %v2193 = vpop.permute.xlu0 %2192
        %2194 = vrot.lane.b32.xlu0 %v2185, 16
        %v2195 = vpop.permute.xlu0 %2194
        %2196 = vrot.lane.b32.xlu0 %v2188, 16
        %v2197 = vpop.permute.xlu0 %2196
        %2198 = vrot.lane.b32.xlu0 %v2191, 16
        %v2199 = vpop.permute.xlu0 %2198
        %v2200 = vsel %vm432, %v2193, %v2176
        %v2201 = vsel %vm432, %v2195, %v2177
        %v2202 = vsel %vm432, %v2197, %v2178
        %v2203 = vsel %vm432, %v2199, %v2179
        %2208 = vrot.lane.b32.xlu0 %v2200, 113
        %v2209 = vpop.permute.xlu0 %2208
        %2210 = vrot.lane.b32.xlu0 %v2201, 113
        %v2211 = vpop.permute.xlu0 %2210
        %2212 = vrot.lane.b32.xlu0 %v2202, 113
        %v2213 = vpop.permute.xlu0 %2212
        %2214 = vrot.lane.b32.xlu0 %v2203, 113
        %v2215 = vpop.permute.xlu0 %2214
        %v2220 = vsel %vm440, 0.0, %v2209
        %v2221 = vsel %vm440, 0.0, %v2211
        %v2222 = vsel %vm440, 0.0, %v2213
        %v2223 = vsel %vm440, 0.0, %v2215
        %2224 = vrot.lane.b32.xlu0 %v2200, 127
        %v2225 = vpop.permute.xlu0 %2224
        %2226 = vrot.lane.b32.xlu0 %v2201, 127
        %v2227 = vpop.permute.xlu0 %2226
        %2228 = vrot.lane.b32.xlu0 %v2202, 127
        %v2229 = vpop.permute.xlu0 %2228
        %2230 = vrot.lane.b32.xlu0 %v2203, 127
        %v2231 = vpop.permute.xlu0 %2230
        %v2236 = vsel %vm447, 0.0, %v2225
        %v2237 = vsel %vm447, 0.0, %v2227
        %v2238 = vsel %vm447, 0.0, %v2229
        %v2239 = vsel %vm447, 0.0, %v2231
        %v2240 = vld [vmem:[%s10] sm:$0xf]
        %v2241 = vld [vmem:[%s10 + $0x4] sm:$0xf]
        %v2242 = vld [vmem:[%s10 + $0x8] sm:$0xf]
        %v2244 = vsel %vm1852, %v2241, 0
        %2246 = vmatprep.subr.mxu0 0.0
        %2247 = vmatpush1.msra.mxu0 %v2176
        %2248 = vmatprep.subr.mxu0 0.0
        %2249 = vmatpush1.msra.mxu0 %v2177
        %2250 = vmatprep.subr.mxu0 0.0
        %2251 = vmatpush1.msra.mxu0 %v2178
        %2252 = vmatprep.subr.mxu0 0.0
        %2253 = vmatpush1.msra.mxu0 %v2179
        %2254 = vmatprep.subr.mxu0 0.0
        %2255 = vmatpush1.msra.mxu0 0.0
        %2256 = vmatprep.subr.mxu0 0.0
        %2257 = vmatpush1.msra.mxu0 0.0
        %2258 = vmatprep.subr.mxu0 0.0
        %2259 = vmatpush1.msra.mxu0 0.0
        %2260 = vmatprep.subr.mxu0 0.0
        %2261 = vmatpush1.msra.mxu0 0.0
        %2262 = vmatprep.subr.mxu0 0.0
        %2263 = vmatpush1.msra.mxu0 0.0
        %2264 = vmatprep.subr.mxu0 0.0
        %2265 = vmatpush1.msra.mxu0 0.0
        %2266 = vmatprep.subr.mxu0 0.0
        %2267 = vmatpush1.msra.mxu0 0.0
        %2268 = vmatprep.subr.mxu0 0.0
        %2269 = vmatpush1.msra.mxu0 0.0
        %2270 = vmatprep.subr.mxu0 0.0
        %2271 = vmatpush1.msra.mxu0 0.0
        %2272 = vmatprep.subr.mxu0 0.0
        %2273 = vmatpush1.msra.mxu0 0.0
        %2274 = vmatprep.subr.mxu0 0.0
        %2275 = vmatpush1.msra.mxu0 0.0
        %2276 = vmatprep.subr.mxu0 0.0
        %2277 = vmatpush1.msra.mxu0 0.0
        %2278 = vmatprep.subr.mxu0 0.0
        %2279 = vmatpush1.msra.mxu0 0.0
        %2280 = vmatprep.subr.mxu0 0.0
        %2281 = vmatpush1.msra.mxu0 0.0
        %2282 = vmatprep.subr.mxu0 0.0
        %2283 = vmatpush1.msra.mxu0 0.0
        %2284 = vmatprep.subr.mxu0 0.0
        %2285 = vmatpush1.msra.mxu0 0.0
        %2286 = vmatprep.subr.mxu0 0.0
        %2287 = vmatpush1.msra.mxu0 0.0
        %2288 = vmatprep.subr.mxu0 0.0
        %2289 = vmatpush1.msra.mxu0 0.0
        %2290 = vmatprep.subr.mxu0 0.0
        %2291 = vmatpush1.msra.mxu0 0.0
        %2292 = vmatprep.subr.mxu0 0.0
        %2293 = vmatpush1.msra.mxu0 0.0
        %2294 = vmatprep.subr.mxu0 0.0
        %2295 = vmatpush1.msra.mxu0 0.0
        %2296 = vmatprep.subr.mxu0 0.0
        %2297 = vmatpush1.msra.mxu0 0.0
        %2298 = vmatprep.subr.mxu0 0.0
        %2299 = vmatpush1.msra.mxu0 0.0
        %2300 = vmatprep.subr.mxu0 0.0
        %2301 = vmatpush1.msra.mxu0 0.0
        %2302 = vmatprep.subr.mxu0 0.0
        %2303 = vmatpush1.msra.mxu0 0.0
        %2304 = vmatprep.subr.mxu0 0.0
        %2305 = vmatpush1.msra.mxu0 0.0
        %2306 = vmatprep.subr.mxu0 0.0
        %2307 = vmatpush1.msra.mxu0 0.0
        %2308 = vmatprep.subr.mxu0 0.0
        %2309 = vmatpush1.msra.mxu0 0.0
        %2310 = vmatprep.mubr.f32.mxu0 0.0
        %2311 = vmatmul.mubr.f32.gmra.mrb[0].mxu0 %v2244
        %v2312 = vpop.f32.mrb[0].mxu0
        %v2313 = vadd.f32 0.0, %v2312
        %v2314 = vpop.f32.mrb[0].mxu0
        %2315 = vdwg.mxu0
        %v2317 = vsel %vm1852, %v2240, 0
        %2319 = vmatprep.subr.mxu0 0.0
        %2320 = vmatpush1.msra.mxu0 %v2220
        %2321 = vmatprep.subr.mxu0 0.0
        %2322 = vmatpush1.msra.mxu0 %v2221
        %2323 = vmatprep.subr.mxu0 0.0
        %2324 = vmatpush1.msra.mxu0 %v2222
        %2325 = vmatprep.subr.mxu0 0.0
        %2326 = vmatpush1.msra.mxu0 %v2223
        %2327 = vmatprep.subr.mxu0 0.0
        %2328 = vmatpush1.msra.mxu0 0.0
        %2329 = vmatprep.subr.mxu0 0.0
        %2330 = vmatpush1.msra.mxu0 0.0
        %2331 = vmatprep.subr.mxu0 0.0
        %2332 = vmatpush1.msra.mxu0 0.0
        %2333 = vmatprep.subr.mxu0 0.0
        %2334 = vmatpush1.msra.mxu0 0.0
        %2335 = vmatprep.subr.mxu0 0.0
        %2336 = vmatpush1.msra.mxu0 0.0
        %2337 = vmatprep.subr.mxu0 0.0
        %2338 = vmatpush1.msra.mxu0 0.0
        %2339 = vmatprep.subr.mxu0 0.0
        %2340 = vmatpush1.msra.mxu0 0.0
        %2341 = vmatprep.subr.mxu0 0.0
        %2342 = vmatpush1.msra.mxu0 0.0
        %2343 = vmatprep.subr.mxu0 0.0
        %2344 = vmatpush1.msra.mxu0 0.0
        %2345 = vmatprep.subr.mxu0 0.0
        %2346 = vmatpush1.msra.mxu0 0.0
        %2347 = vmatprep.subr.mxu0 0.0
        %2348 = vmatpush1.msra.mxu0 0.0
        %2349 = vmatprep.subr.mxu0 0.0
        %2350 = vmatpush1.msra.mxu0 0.0
        %2351 = vmatprep.subr.mxu0 0.0
        %2352 = vmatpush1.msra.mxu0 0.0
        %2353 = vmatprep.subr.mxu0 0.0
        %2354 = vmatpush1.msra.mxu0 0.0
        %2355 = vmatprep.subr.mxu0 0.0
        %2356 = vmatpush1.msra.mxu0 0.0
        %2357 = vmatprep.subr.mxu0 0.0
        %2358 = vmatpush1.msra.mxu0 0.0
        %2359 = vmatprep.subr.mxu0 0.0
        %2360 = vmatpush1.msra.mxu0 0.0
        %2361 = vmatprep.subr.mxu0 0.0
        %2362 = vmatpush1.msra.mxu0 0.0
        %2363 = vmatprep.subr.mxu0 0.0
        %2364 = vmatpush1.msra.mxu0 0.0
        %2365 = vmatprep.subr.mxu0 0.0
        %2366 = vmatpush1.msra.mxu0 0.0
        %2367 = vmatprep.subr.mxu0 0.0
        %2368 = vmatpush1.msra.mxu0 0.0
        %2369 = vmatprep.subr.mxu0 0.0
        %2370 = vmatpush1.msra.mxu0 0.0
        %2371 = vmatprep.subr.mxu0 0.0
        %2372 = vmatpush1.msra.mxu0 0.0
        %2373 = vmatprep.subr.mxu0 0.0
        %2374 = vmatpush1.msra.mxu0 0.0
        %2375 = vmatprep.subr.mxu0 0.0
        %2376 = vmatpush1.msra.mxu0 0.0
        %2377 = vmatprep.subr.mxu0 0.0
        %2378 = vmatpush1.msra.mxu0 0.0
        %2379 = vmatprep.subr.mxu0 0.0
        %2380 = vmatpush1.msra.mxu0 0.0
        %2381 = vmatprep.subr.mxu0 0.0
        %2382 = vmatpush1.msra.mxu0 0.0
        %2383 = vmatprep.mubr.f32.mxu0 0.0
        %2384 = vmatmul.mubr.f32.gmra.mrb[0].mxu0 %v2317
        %v2385 = vpop.f32.mrb[0].mxu0
        %v2386 = vadd.f32 %v2313, %v2385
        %v2387 = vpop.f32.mrb[0].mxu0
        %2388 = vdwg.mxu0
        %v2390 = vsel %vm1852, %v2242, 0
        %2392 = vmatprep.subr.mxu0 0.0
        %2393 = vmatpush1.msra.mxu0 %v2236
        %2394 = vmatprep.subr.mxu0 0.0
        %2395 = vmatpush1.msra.mxu0 %v2237
        %2396 = vmatprep.subr.mxu0 0.0
        %2397 = vmatpush1.msra.mxu0 %v2238
        %2398 = vmatprep.subr.mxu0 0.0
        %2399 = vmatpush1.msra.mxu0 %v2239
        %2400 = vmatprep.subr.mxu0 0.0
        %2401 = vmatpush1.msra.mxu0 0.0
        %2402 = vmatprep.subr.mxu0 0.0
        %2403 = vmatpush1.msra.mxu0 0.0
        %2404 = vmatprep.subr.mxu0 0.0
        %2405 = vmatpush1.msra.mxu0 0.0
        %2406 = vmatprep.subr.mxu0 0.0
        %2407 = vmatpush1.msra.mxu0 0.0
        %2408 = vmatprep.subr.mxu0 0.0
        %2409 = vmatpush1.msra.mxu0 0.0
        %2410 = vmatprep.subr.mxu0 0.0
        %2411 = vmatpush1.msra.mxu0 0.0
        %2412 = vmatprep.subr.mxu0 0.0
        %2413 = vmatpush1.msra.mxu0 0.0
        %2414 = vmatprep.subr.mxu0 0.0
        %2415 = vmatpush1.msra.mxu0 0.0
        %2416 = vmatprep.subr.mxu0 0.0
        %2417 = vmatpush1.msra.mxu0 0.0
        %2418 = vmatprep.subr.mxu0 0.0
        %2419 = vmatpush1.msra.mxu0 0.0
        %2420 = vmatprep.subr.mxu0 0.0
        %2421 = vmatpush1.msra.mxu0 0.0
        %2422 = vmatprep.subr.mxu0 0.0
        %2423 = vmatpush1.msra.mxu0 0.0
        %2424 = vmatprep.subr.mxu0 0.0
        %2425 = vmatpush1.msra.mxu0 0.0
        %2426 = vmatprep.subr.mxu0 0.0
        %2427 = vmatpush1.msra.mxu0 0.0
        %2428 = vmatprep.subr.mxu0 0.0
        %2429 = vmatpush1.msra.mxu0 0.0
        %2430 = vmatprep.subr.mxu0 0.0
        %2431 = vmatpush1.msra.mxu0 0.0
        %2432 = vmatprep.subr.mxu0 0.0
        %2433 = vmatpush1.msra.mxu0 0.0
        %2434 = vmatprep.subr.mxu0 0.0
        %2435 = vmatpush1.msra.mxu0 0.0
        %2436 = vmatprep.subr.mxu0 0.0
        %2437 = vmatpush1.msra.mxu0 0.0
        %2438 = vmatprep.subr.mxu0 0.0
        %2439 = vmatpush1.msra.mxu0 0.0
        %2440 = vmatprep.subr.mxu0 0.0
        %2441 = vmatpush1.msra.mxu0 0.0
        %2442 = vmatprep.subr.mxu0 0.0
        %2443 = vmatpush1.msra.mxu0 0.0
        %2444 = vmatprep.subr.mxu0 0.0
        %2445 = vmatpush1.msra.mxu0 0.0
        %2446 = vmatprep.subr.mxu0 0.0
        %2447 = vmatpush1.msra.mxu0 0.0
        %2448 = vmatprep.subr.mxu0 0.0
        %2449 = vmatpush1.msra.mxu0 0.0
        %2450 = vmatprep.subr.mxu0 0.0
        %2451 = vmatpush1.msra.mxu0 0.0
        %2452 = vmatprep.subr.mxu0 0.0
        %2453 = vmatpush1.msra.mxu0 0.0
        %2454 = vmatprep.subr.mxu0 0.0
        %2455 = vmatpush1.msra.mxu0 0.0
        %2456 = vmatprep.mubr.f32.mxu0 0.0
        %2457 = vmatmul.mubr.f32.gmra.mrb[0].mxu0 %v2390
        %v2458 = vpop.f32.mrb[0].mxu0
        %v2459 = vadd.f32 0.0, %v2458
        %v2460 = vpop.f32.mrb[0].mxu0
        %2461 = vdwg.mxu0
        %v2462 = vadd.f32 %v2386, %v2459
        %v2463 = vld [vmem:[%s11] sm:$0xf]
        %2465 = vset.pattern.permute.xlu0 0
        %2466 = vperm.xlu0 %2465, %v2463
        %v2467 = vpop.permute.xlu0 %2466
        %v2469 = vadd.f32 %v2462, %v2467
        %vm2470 = vcmask 125952
        %2471 = vst.msk [vmem:[%s417] sm:$0xf] %vm2470, %v2469
        %s2472 = sand.u32 %s296, 1
        %s2473 = scalar_lea.sflag [#allocation3], %s2472
        %s2474 = sand.u32 %s296, 1
        %s2475 = smul.addr %s2474, 4
        %s2476 = scalar_lea.vmem [#allocation2], %s2475
        // Predicated region
        $region69: #{tpu_custom_call.1} parent=67 // pred_check
          %p2477 = pneg %p306
        $region70: #{tpu_custom_call.1} parent=67 // pred_check_branch
          %2479 = sbr.rel (%p2477) target = $region72
        $region71: #{tpu_custom_call.1} parent=67 // pred_region
          %s2481 = ssub.s32 64, 64
          %2482 = vsyncadd %s2473, %s2481
          %s2483 = smul.addr %s26, 64
          %s2484 = scalar_lea.hbm %s12, %s2483
          %s2486 = sshll.u32 %s2476, 4
          %s2487 = int_to_ptr.vmem [resolvable:$true] %s2486
          %2489 = dma.vmem_to_hbm [thread:$0]  %s2487, 64, %s2484, %s2473
        $region72: #{tpu_custom_call.1} parent=67 // pred_fallthru
          _
      $region68: #{tpu_custom_call.1} parent=5 // pred_fallthru
        _
      %p2490 = scmp.le.s32.totalorder 2, %s21
      // Predicated region
      $region73: #{tpu_custom_call.1} parent=5 // pred_check
        %p2491 = pneg %p2490
      $region74: #{tpu_custom_call.1} parent=5 // pred_check_branch
        %2493 = sbr.rel (%p2491) target = $region76
      $region75: #{tpu_custom_call.1} parent=5 // pred_region
        %s2494 = ssub.s32 %s21, 2
        // Predicated region
        $region77: #{tpu_custom_call.1} parent=75 // pred_check
          %p2495 = pneg %p312
        $region78: #{tpu_custom_call.1} parent=75 // pred_check_branch
          %2497 = sbr.rel (%p2495) target = $region80
        $region79: #{tpu_custom_call.1} parent=75 // pred_region
          %s2498 = sand.u32 %s297, 1
          %s2499 = scalar_lea.sflag [#allocation3], %s2498
          %s2500 = sand.u32 %s297, 1
          %s2501 = smul.addr %s2500, 4
          %s2502 = scalar_lea.vmem [#allocation2], %s2501
          %2503 = dma.done %s2499, 64
        $region80: #{tpu_custom_call.1} parent=75 // pred_fallthru
          _
      $region76: #{tpu_custom_call.1} parent=5 // pred_fallthru
        _
    $region6: #{tpu_custom_call.1} parent=1 // loop_footer
      %s25 = sadd.s32 1, %s21
    $region7: #{tpu_custom_call.1} parent=1 // loop_footer_branch
      %20 = sbr.rel target = $region3
    $region8: #{tpu_custom_call.1} parent=1 // loop_exit
      _
    %2504 = vsyncpa [#allocation3], 1
    %s2505 = scalar_lea.sflag [#allocation3], 1
    %2506 = vsyncpa %s2505, 1

</llo_original>
